<compile_context>
chip_gen: v5e
topology: v5e:2x2
jax: 0.10.0
libtpu: 0.0.40
codegen_flags: <defaults>
</compile_context>

<pallas_src>
import math
import jax
import jax.numpy as jnp
from jax import lax
from jax.experimental import pallas as pl
from jax.experimental.pallas import tpu as pltpu


OUT_LANES = 128   # lane-dense output width; real values live in lanes 0..17
N_SCALARS = 14
N_AGG = 4


def _round_up(x, m):
    return ((x + m - 1) // m) * m


# ----------------------------------------------------------------------------
# Pallas kernel
# ----------------------------------------------------------------------------
def _quality_kernel(img_ref, text_ref,
                    iwf, ib1, iw2, ib2, iw3t, ib3,
                    twf, tb1, tw2, tb2, tw3t, tb3,
                    sb1, sw2, sb2, sw3t, sb3,
                    aw1, ab1, aw2t, ab2c,
                    out_ref):
    img = img_ref[...]
    text = text_ref[...]
    TB, H = img.shape
    f32 = jnp.float32
    bf16 = jnp.bfloat16

    # cast once for the MXU; statistics stay f32
    img_bf = img.astype(bf16)
    text_bf = text.astype(bf16)

    def dot(a, b):
        return jnp.dot(a, b, preferred_element_type=f32)

    def row_sum(x):
        return jnp.sum(x, axis=-1, keepdims=True)

    # ---- shared per-row moments: each cross-lane reduction computed once ----
    def moments(f):
        absf = jnp.abs(f)
        s1 = row_sum(f)                                   # sum f
        s2 = row_sum(f * f)                               # sum f^2
        sabs = row_sum(absf)                              # sum |f|
        m = jnp.max(absf, axis=-1, keepdims=True)
        sh = absf - m
        e = jnp.exp(sh)
        z = row_sum(e)                                    # softmax partition
        es = row_sum(e * sh)                              # sum e*(|f|-m)
        sp = row_sum((absf < 0.01).astype(f32))
        return s1, s2, sabs, z, es, sp

    i_s1, i_s2, i_sabs, i_z, i_es, i_sp = moments(img)
    t_s1, t_s2, t_sabs, t_z, t_es, t_sp = moments(text)
    dot_it = row_sum(img * text)

    ideal = math.sqrt(H)
    log_h = math.log(H)

    def intrinsic(s1, s2, sabs, z, es, sp):
        norm = jnp.sqrt(s2)
        norm_stab = jnp.exp(-jnp.abs(norm - ideal) / ideal)
        # entropy of softmax(|f|) via log-sum-exp: H = log(Z) - E_p[|f|-max]
        entropy = jnp.log(z) - es / z
        informativeness = entropy / log_h
        var = (s2 - s1 * s1 / H) / (H - 1)                # one-pass unbiased var
        mean_abs = sabs / H
        diversity = jax.nn.sigmoid(var / jnp.maximum(mean_abs, 1e-20))
        sp_ratio = sp / H
        sparsity_q = jnp.exp(-jnp.abs(sp_ratio - 0.1) / 0.1)
        return norm, norm_stab, informativeness, diversity, sparsity_q

    i_norm, i_ns, i_info, i_div, i_spq = intrinsic(i_s1, i_s2, i_sabs, i_z, i_es, i_sp)
    t_norm, t_ns, t_info, t_div, t_spq = intrinsic(t_s1, t_s2, t_sabs, t_z, t_es, t_sp)

    # ---- cross-modal alignment, re-using the shared reductions ---------------
    cos = dot_it / (jnp.maximum(i_norm, 1e-8) * jnp.maximum(t_norm, 1e-8))
    sem_align = (cos + 1.0) * 0.5
    cross_c = dot_it - i_s1 * t_s1 / H                    # sum(img_c * text_c)
    i_cn = i_s2 - i_s1 * i_s1 / H                         # sum(img_c^2)
    t_cn = t_s2 - t_s1 * t_s1 / H                         # sum(text_c^2)
    cka = (cross_c * cross_c) / (i_cn * t_cn + 1e-8)
    dist = jnp.sqrt(jnp.maximum(i_s2 + t_s2 - 2.0 * dot_it, 0.0))
    dist_q = 1.0 - dist / (i_norm + t_norm + 1e-8)

    # ---- fused layer-1: one (TB,H)x(H, H + H/2) bf16 matmul per modality ------
    #   columns [0:H]      -> synergy-net layer-1 contribution
    #   columns [H:H+H/2]  -> relevance-net layer-1 pre-activation
    img_l1 = dot(img_bf, iwf[...])                        # (TB, H + H/2) f32
    text_l1 = dot(text_bf, twf[...])
    syn_img = img_l1[:, :H]
    syn_text = text_l1[:, :H]
    rel_img_h1 = img_l1[:, H:]
    rel_text_h1 = text_l1[:, H:]

    # ---- relevance MLPs (eval mode: dropout == identity) ----------------------
    def relevance_tail(h1_pre, b1, w2, b2, w3t, b3):
        h = jnp.maximum(h1_pre + b1[...], 0.0)
        h = jnp.maximum(dot(h.astype(bf16), w2[...]) + b2[...], 0.0)
        # final (H/4 -> 1) layer on the VPU: broadcast multiply + lane reduce (f32)
        return jax.nn.sigmoid(row_sum(h * w3t[...]) + b3[...])

    img_rel = relevance_tail(rel_img_h1, ib1, iw2, ib2, iw3t, ib3)
    text_rel = relevance_tail(rel_text_h1, tb1, tw2, tb2, tw3t, tb3)

    # synergy net: img/text layer-1 contributions summed, no (TB,2H) concat
    h = jnp.maximum(syn_img + syn_text + sb1[...], 0.0)
    h = jnp.maximum(dot(h.astype(bf16), sw2[...]) + sb2[...], 0.0)
    synergy = jax.nn.sigmoid(row_sum(h * sw3t[...]) + sb3[...])

    # ---- quality aggregator (8 -> 16 -> 4) entirely on the VPU (f32) ----------
    qv = [i_ns, i_info, t_ns, t_info, sem_align, img_rel, text_rel, synergy]
    a1 = aw1[...]                                         # (8, 16)
    acc = ab1[...]                                        # (1, 16), broadcasts
    for i, q in enumerate(qv):
        acc = acc + q * a1[i:i + 1, :]                    # (TB,1)*(1,16) -> (TB,16)
    h_agg = jnp.maximum(acc, 0.0)
    a2t = aw2t[...]                                       # (4, 16)
    b2c = ab2c[...]                                       # (4, 1)
    agg = [jax.nn.sigmoid(row_sum(h_agg * a2t[k:k + 1, :]) + b2c[k:k + 1, :])
           for k in range(N_AGG)]

    # ---- lane-dense output: single unmasked full-width store ------------------
    vals = [i_ns, i_info, i_div, i_spq,
            t_ns, t_info, t_div, t_spq,
            sem_align, cka, dist_q,
            img_rel, text_rel, synergy] + agg
    lane = lax.broadcasted_iota(jnp.int32, (TB, OUT_LANES), 1)
    out = jnp.zeros((TB, OUT_LANES), f32)
    for k, v in enumerate(vals):
        out = jnp.where(lane == k, v, out)
    out_ref[...] = out


# ----------------------------------------------------------------------------
# wrapper: batch grid, resident bf16 matmul weights, padded lane-dense output
# ----------------------------------------------------------------------------
def _pack_params_for_kernel(params, H):
    (iw1, ib1, iw2, ib2, iw3, ib3,
     tw1, tb1, tw2, tb2, tw3, tb3,
     sw1, sb1, sw2, sb2, sw3, sb3,
     aw1, ab1, aw2, ab2) = params
    bf16 = jnp.bfloat16
    # fuse the layer-1 matmuls that share an LHS; split point at column H is a
    # 128-lane boundary whenever H % 128 == 0
    iwf = jnp.concatenate([sw1[:H], iw1], axis=1).astype(bf16)   # (H, H + H/2)
    twf = jnp.concatenate([sw1[H:], tw1], axis=1).astype(bf16)
    return (iwf, ib1, iw2.astype(bf16), ib2, iw3.T, ib3,
            twf, tb1, tw2.astype(bf16), tb2, tw3.T, tb3,
            sb1, sw2.astype(bf16), sb2, sw3.T, sb3,
            aw1, ab1, aw2.T, ab2.T)


def _choose_tb(B, block_b):
    """Batch tile: multiple of 8, divides the 8-aligned batch, <= block_b, and
    (when possible) leaves >= 2 grid steps so v7x shards across its 2 TCs."""
    B8 = _round_up(B, 8)
    cap = min(max(block_b, 8), B8)
    if B8 >= 16:
        cap = min(cap, B8 // 2)          # keep grid >= 2 for megacore sharding
    cap = max(8, (cap // 8) * 8)
    tb = 8
    for cand in range(8, cap + 1, 8):
        if B8 % cand == 0:
            tb = cand
    return tb, B8


def _vmem_cap_bytes():
    try:
        cap = int(pltpu.get_tpu_info().vmem_capacity_bytes)   # 128 MiB v5e/v6e, 64 MiB v7x
    except Exception:
        cap = 64 << 20                                         # conservative fallback
    return max(int(0.8 * cap), 32 << 20)


def _cost_estimate(B, H, weight_bytes):
    mac = 2 * H * (H + H // 2)                        # fused layer-1, img + text
    mac += 2 * ((H // 2) * (H // 4) + (H // 4))       # relevance layer-2 + VPU layer-3
    mac += H * (H // 2) + (H // 2)                    # synergy layer-2 + VPU layer-3
    mac += 8 * 16 + 16 * 4                            # aggregator
    flops = 2 * B * mac + 60 * B * H                  # + elementwise/reductions
    transcendentals = B * (2 * H + 40)                # softmax exps + sigmoid/exp/log
    bytes_accessed = 2 * B * H * 4 + weight_bytes + B * OUT_LANES * 4
    return pl.CostEstimate(flops=flops, transcendentals=transcendentals,
                           bytes_accessed=bytes_accessed)


def run_quality_kernel(img, text, params, *, block_b=512):
    B, H = img.shape
    assert H % 4 == 0, "hidden size must be divisible by 4"

    TB, B_pad = _choose_tb(B, block_b)
    if B_pad != B:
        # TODO(synk): provide B % 8 == 0 batches upstream to avoid this copy entirely;
        # here the pad is at most 7 rows (TB divides the 8-aligned batch).
        pad = jnp.zeros((B_pad - B, H), img.dtype)
        img_p = jnp.concatenate([img, pad], axis=0)
        text_p = jnp.concatenate([text, pad], axis=0)
    else:
        img_p, text_p = img, text

    kparams = _pack_params_for_kernel(params, H)
    weight_bytes = sum(int(p.size) * p.dtype.itemsize for p in kparams)

    feat_spec = pl.BlockSpec((TB, H), lambda i: (i, 0))
    # constant index_map -> weights DMA'd once and stay VMEM-resident across steps
    w_specs = [pl.BlockSpec(p.shape, lambda i: (0, 0)) for p in kparams]
    out_spec = pl.BlockSpec((TB, OUT_LANES), lambda i: (i, 0))

    vmem_need = (2 * weight_bytes                # weights are still double-buffered
                 + 2 * 2 * TB * H * 4            # double-buffered f32 img/text tiles
                 + 2 * TB * OUT_LANES * 4        # double-buffered output tile
                 + 8 * TB * H * 4                # moments / bf16 / matmul temporaries
                 + (2 << 20))                    # fixed headroom
    vmem_limit = int(min(max(vmem_need, 32 << 20), _vmem_cap_bytes()))

    out = pl.pallas_call(
        _quality_kernel,
        out_shape=jax.ShapeDtypeStruct((B_pad, OUT_LANES), jnp.float32),
        grid_spec=pltpu.PrefetchScalarGridSpec(
            num_scalar_prefetch=0,
            grid=(B_pad // TB,),
            in_specs=[feat_spec, feat_spec] + w_specs,
            out_specs=out_spec),
        compiler_params=pltpu.CompilerParams(
            dimension_semantics=("parallel",),      # v7x: split batch across 2 TCs
            vmem_limit_bytes=vmem_limit),
        cost_estimate=_cost_estimate(B_pad, H, weight_bytes),
    )(img_p, text_p, *kparams)

    scalars = out[:B, :N_SCALARS]
    agg = out[:B, N_SCALARS:N_SCALARS + N_AGG]
    return scalars, agg


def enhanced_quality_estimator_forward(img, text, params, *, block_b=512):
    """Rebuild the per-field output structure of the PyTorch module (batched)."""
    s, agg = run_quality_kernel(img, text, params, block_b=block_b)
    half = jnp.full((img.shape[0],), 0.5, jnp.float32)  # no task_forward_fn path
    return {
        'img_intrinsic_quality': {'norm_stability': s[:, 0], 'informativeness': s[:, 1],
                                  'diversity': s[:, 2], 'sparsity_quality': s[:, 3]},
        'text_intrinsic_quality': {'norm_stability': s[:, 4], 'informativeness': s[:, 5],
                                   'diversity': s[:, 6], 'sparsity_quality': s[:, 7]},
        'cross_modal_alignment': {'semantic_alignment': s[:, 8],
                                  'representation_alignment': s[:, 9],
                                  'distance_quality': s[:, 10]},
        'task_relevance': {'img_task_relevance': s[:, 11],
                           'text_task_relevance': s[:, 12],
                           'cross_modal_synergy': s[:, 13]},
        'perturbation_sensitivity': {'img_noise_sensitivity': half,
                                     'text_noise_sensitivity': half,
                                     'img_mask_sensitivity': half,
                                     'text_mask_sensitivity': half},
        'overall_img_quality': agg[:, 0],
        'overall_text_quality': agg[:, 1],
        'overall_cross_modal_quality': agg[:, 2],
        'overall_confidence': agg[:, 3],
        'predictor_loss': jnp.zeros((img.shape[0],), jnp.float32),
    }
    # TODO(synk): gradient-based relevance / perturbation-sensitivity branches only
    # trigger with task_loss / task_forward_fn (training-time autograd + host prints);
    # they are not part of the inference forward implemented here.


# ----------------------------------------------------------------------------
# deterministic parameter init (torch-layout: weight [in,out], bias [1,out])
# ----------------------------------------------------------------------------
def init_params(key, H):
    def linear(k, fin, fout):
        kw, kb = jax.random.split(k)
        bound = 1.0 / math.sqrt(fin)
        w = jax.random.uniform(kw, (fin, fout), jnp.float32, -bound, bound)
        b = jax.random.uniform(kb, (1, fout), jnp.float32, -bound, bound)
        return w, b

    keys = iter(jax.random.split(key, 11))
    params = []
    for fin, fout in [(H, H // 2), (H // 2, H // 4), (H // 4, 1)]:   # img_relevance_net
        params += list(linear(next(keys), fin, fout))
    for fin, fout in [(H, H // 2), (H // 2, H // 4), (H // 4, 1)]:   # text_relevance_net
        params += list(linear(next(keys), fin, fout))
    for fin, fout in [(2 * H, H), (H, H // 2), (H // 2, 1)]:         # synergy_net
        params += list(linear(next(keys), fin, fout))
    for fin, fout in [(8, 16), (16, 4)]:                             # quality_aggregator
        params += list(linear(next(keys), fin, fout))
    return tuple(params)


# ----------------------------------------------------------------------------
# pure-JAX reference: faithful to the torch eval-path math (two-pass variance,
# direct entropy with +1e-8, direct distances), highest matmul precision, f32.
# ----------------------------------------------------------------------------
def _ref_intrinsic(f, H):
    norms = jnp.sqrt(jnp.sum(f * f, axis=-1, keepdims=True))
    ideal = math.sqrt(H)
    norm_stability = jnp.exp(-jnp.abs(norms - ideal) / ideal)
    absf = jnp.abs(f)
    m = jnp.max(absf, axis=-1, keepdims=True)
    e = jnp.exp(absf - m)
    probs = e / jnp.sum(e, axis=-1, keepdims=True)
    entropy = -jnp.sum(probs * jnp.log(probs + 1e-8), axis=-1, keepdims=True)
    informativeness = entropy / math.log(H)
    mean = jnp.mean(f, axis=-1, keepdims=True)
    var = jnp.sum((f - mean) ** 2, axis=-1, keepdims=True) / (H - 1)
    mean_abs = jnp.mean(absf, axis=-1, keepdims=True)
    diversity = jax.nn.sigmoid(var / mean_abs)
    sparsity_ratio = jnp.mean((absf < 0.01).astype(jnp.float32), axis=-1, keepdims=True)
    sparsity_quality = jnp.exp(-jnp.abs(sparsity_ratio - 0.1) / 0.1)
    return norm_stability, informativeness, diversity, sparsity_quality


def _ref_cross_modal(img, text):
    dot = jnp.sum(img * text, axis=-1, keepdims=True)
    inorm = jnp.sqrt(jnp.sum(img * img, axis=-1, keepdims=True))
    tnorm = jnp.sqrt(jnp.sum(text * text, axis=-1, keepdims=True))
    cos = dot / (jnp.maximum(inorm, 1e-8) * jnp.maximum(tnorm, 1e-8))
    semantic_alignment = (cos + 1.0) / 2.0
    img_c = img - jnp.mean(img, axis=-1, keepdims=True)
    text_c = text - jnp.mean(text, axis=-1, keepdims=True)
    num = jnp.sum(img_c * text_c, axis=-1, keepdims=True) ** 2
    den = (jnp.sum(img_c * img_c, axis=-1, keepdims=True)
           * jnp.sum(text_c * text_c, axis=-1, keepdims=True) + 1e-8)
    cka_score = num / den
    dist = jnp.sqrt(jnp.sum((img - text) ** 2, axis=-1, keepdims=True))
    distance_quality = 1.0 - dist / (inorm + tnorm + 1e-8)
    return semantic_alignment, cka_score, distance_quality


def _ref_mlp3(x, w1, b1, w2, b2, w3, b3):
    prec = lax.Precision.HIGHEST
    h = jnp.maximum(jnp.dot(x, w1, precision=prec) + b1, 0.0)
    h = jnp.maximum(jnp.dot(h, w2, precision=prec) + b2, 0.0)
    return jax.nn.sigmoid(jnp.dot(h, w3, precision=prec) + b3)


def reference_forward(img, text, params):
    (iw1, ib1, iw2, ib2, iw3, ib3,
     tw1, tb1, tw2, tb2, tw3, tb3,
     sw1, sb1, sw2, sb2, sw3, sb3,
     aw1, ab1, aw2, ab2) = params
    H = img.shape[-1]
    prec = lax.Precision.HIGHEST
    i_ns, i_info, i_div, i_sp = _ref_intrinsic(img, H)
    t_ns, t_info, t_div, t_sp = _ref_intrinsic(text, H)
    sem, cka, dq = _ref_cross_modal(img, text)
    img_rel = _ref_mlp3(img, iw1, ib1, iw2, ib2, iw3, ib3)
    text_rel = _ref_mlp3(text, tw1, tb1, tw2, tb2, tw3, tb3)
    synergy = _ref_mlp3(jnp.concatenate([img, text], -1), sw1, sb1, sw2, sb2, sw3, sb3)
    qv = jnp.concatenate([i_ns, i_info, t_ns, t_info, sem, img_rel, text_rel, synergy], -1)
    h = jnp.maximum(jnp.dot(qv, aw1, precision=prec) + ab1, 0.0)
    agg = jax.nn.sigmoid(jnp.dot(h, aw2, precision=prec) + ab2)
    scalars = jnp.concatenate([i_ns, i_info, i_div, i_sp,
                               t_ns, t_info, t_div, t_sp,
                               sem, cka, dq, img_rel, text_rel, synergy], -1)
    return scalars, agg


if __name__ == "__main__":
    B, H = 20, 128   # small shapes (module default hidden_size is 512)
    key = jax.random.PRNGKey(0)
    k_img, k_text, k_par = jax.random.split(key, 3)
    img_feat = jax.random.normal(k_img, (B, H), jnp.float32)
    text_feat = jax.random.normal(k_text, (B, H), jnp.float32)
    params = init_params(k_par, H)

    # block_b=8 exercises the batch grid (grid=(3,)) and the small row padding (20 -> 24)
    scalars, agg = run_quality_kernel(img_feat, text_feat, params, block_b=8)
    jax.block_until_ready(scalars)
    jax.block_until_ready(agg)

    ref_scalars, ref_agg = reference_forward(img_feat, text_feat, params)
    assert jnp.allclose(scalars, ref_scalars, atol=5e-3, rtol=1e-3), "scalar outputs mismatch"
    assert jnp.allclose(agg, ref_agg, atol=5e-3, rtol=1e-3), "aggregated outputs mismatch"

    # exercise the structured-output wrapper path (default batch tile) too
    out = enhanced_quality_estimator_forward(img_feat, text_feat, params)
    jax.tree_util.tree_map(jax.block_until_ready, out)

    print("KERNEL_OK")
</pallas_src>

<mosaic_0001>
module attributes {stable_mosaic.version = 11 : i64} {
  func.func @_quality_kernel(%arg0: i32, %arg1: memref<8x128xf32, #tpu.memory_space<vmem>>, %arg2: memref<8x128xf32, #tpu.memory_space<vmem>>, %arg3: memref<128x192xbf16, #tpu.memory_space<vmem>>, %arg4: memref<1x64xf32, #tpu.memory_space<vmem>>, %arg5: memref<64x32xbf16, #tpu.memory_space<vmem>>, %arg6: memref<1x32xf32, #tpu.memory_space<vmem>>, %arg7: memref<1x32xf32, #tpu.memory_space<vmem>>, %arg8: memref<1x1xf32, #tpu.memory_space<vmem>>, %arg9: memref<128x192xbf16, #tpu.memory_space<vmem>>, %arg10: memref<1x64xf32, #tpu.memory_space<vmem>>, %arg11: memref<64x32xbf16, #tpu.memory_space<vmem>>, %arg12: memref<1x32xf32, #tpu.memory_space<vmem>>, %arg13: memref<1x32xf32, #tpu.memory_space<vmem>>, %arg14: memref<1x1xf32, #tpu.memory_space<vmem>>, %arg15: memref<1x128xf32, #tpu.memory_space<vmem>>, %arg16: memref<128x64xbf16, #tpu.memory_space<vmem>>, %arg17: memref<1x64xf32, #tpu.memory_space<vmem>>, %arg18: memref<1x64xf32, #tpu.memory_space<vmem>>, %arg19: memref<1x1xf32, #tpu.memory_space<vmem>>, %arg20: memref<8x16xf32, #tpu.memory_space<vmem>>, %arg21: memref<1x16xf32, #tpu.memory_space<vmem>>, %arg22: memref<4x16xf32, #tpu.memory_space<vmem>>, %arg23: memref<4x1xf32, #tpu.memory_space<vmem>>, %arg24: memref<8x128xf32, #tpu.memory_space<vmem>>) attributes {dimension_semantics = [#tpu.dimension_semantics<parallel>], iteration_bounds = array<i64: 3>, scalar_prefetch = 0 : i64, scratch_operands = 0 : i64, tpu.core_type = #tpu.core_type<tc>, window_params = [{transform_indices = @transform_0, window_bounds = array<i64: 8, 128>}, {transform_indices = @transform_1, window_bounds = array<i64: 8, 128>}, {pipeline_mode = #tpu.pipeline_mode<synchronous>, transform_indices = @transform_2, window_bounds = array<i64: 128, 192>}, {pipeline_mode = #tpu.pipeline_mode<synchronous>, transform_indices = @transform_3, window_bounds = array<i64: 1, 64>}, {pipeline_mode = #tpu.pipeline_mode<synchronous>, transform_indices = @transform_4, window_bounds = array<i64: 64, 32>}, {pipeline_mode = #tpu.pipeline_mode<synchronous>, transform_indices = @transform_5, window_bounds = array<i64: 1, 32>}, {pipeline_mode = #tpu.pipeline_mode<synchronous>, transform_indices = @transform_6, window_bounds = array<i64: 1, 32>}, {pipeline_mode = #tpu.pipeline_mode<synchronous>, transform_indices = @transform_7, window_bounds = array<i64: 1, 1>}, {pipeline_mode = #tpu.pipeline_mode<synchronous>, transform_indices = @transform_8, window_bounds = array<i64: 128, 192>}, {pipeline_mode = #tpu.pipeline_mode<synchronous>, transform_indices = @transform_9, window_bounds = array<i64: 1, 64>}, {pipeline_mode = #tpu.pipeline_mode<synchronous>, transform_indices = @transform_10, window_bounds = array<i64: 64, 32>}, {pipeline_mode = #tpu.pipeline_mode<synchronous>, transform_indices = @transform_11, window_bounds = array<i64: 1, 32>}, {pipeline_mode = #tpu.pipeline_mode<synchronous>, transform_indices = @transform_12, window_bounds = array<i64: 1, 32>}, {pipeline_mode = #tpu.pipeline_mode<synchronous>, transform_indices = @transform_13, window_bounds = array<i64: 1, 1>}, {pipeline_mode = #tpu.pipeline_mode<synchronous>, transform_indices = @transform_14, window_bounds = array<i64: 1, 128>}, {pipeline_mode = #tpu.pipeline_mode<synchronous>, transform_indices = @transform_15, window_bounds = array<i64: 128, 64>}, {pipeline_mode = #tpu.pipeline_mode<synchronous>, transform_indices = @transform_16, window_bounds = array<i64: 1, 64>}, {pipeline_mode = #tpu.pipeline_mode<synchronous>, transform_indices = @transform_17, window_bounds = array<i64: 1, 64>}, {pipeline_mode = #tpu.pipeline_mode<synchronous>, transform_indices = @transform_18, window_bounds = array<i64: 1, 1>}, {pipeline_mode = #tpu.pipeline_mode<synchronous>, transform_indices = @transform_19, window_bounds = array<i64: 8, 16>}, {pipeline_mode = #tpu.pipeline_mode<synchronous>, transform_indices = @transform_20, window_bounds = array<i64: 1, 16>}, {pipeline_mode = #tpu.pipeline_mode<synchronous>, transform_indices = @transform_21, window_bounds = array<i64: 4, 16>}, {pipeline_mode = #tpu.pipeline_mode<synchronous>, transform_indices = @transform_22, window_bounds = array<i64: 4, 1>}, {transform_indices = @transform_23, window_bounds = array<i64: 8, 128>}]} {
    %c0 = arith.constant 0 : index
    %c0_0 = arith.constant 0 : index
    %0 = vector.load %arg1[%c0, %c0_0] : memref<8x128xf32, #tpu.memory_space<vmem>>, vector<8x128xf32>
    %c0_1 = arith.constant 0 : index
    %c0_2 = arith.constant 0 : index
    %1 = vector.load %arg2[%c0_1, %c0_2] : memref<8x128xf32, #tpu.memory_space<vmem>>, vector<8x128xf32>
    %2 = arith.truncf %0 : vector<8x128xf32> to vector<8x128xbf16>
    %3 = arith.truncf %1 : vector<8x128xf32> to vector<8x128xbf16>
    %4 = math.absf %0 : vector<8x128xf32>
    %cst = arith.constant dense<0.000000e+00> : vector<8xf32>
    %5 = vector.multi_reduction <add>, %0, %cst [1] : vector<8x128xf32> to vector<8xf32>
    %6 = vector.shape_cast %5 : vector<8xf32> to vector<8x1xf32>
    %7 = arith.mulf %0, %0 : vector<8x128xf32>
    %cst_3 = arith.constant dense<0.000000e+00> : vector<8xf32>
    %8 = vector.multi_reduction <add>, %7, %cst_3 [1] : vector<8x128xf32> to vector<8xf32>
    %9 = vector.shape_cast %8 : vector<8xf32> to vector<8x1xf32>
    %cst_4 = arith.constant dense<0.000000e+00> : vector<8xf32>
    %10 = vector.multi_reduction <add>, %4, %cst_4 [1] : vector<8x128xf32> to vector<8xf32>
    %11 = vector.shape_cast %10 : vector<8xf32> to vector<8x1xf32>
    %cst_5 = arith.constant dense<0xFF800000> : vector<8xf32>
    %12 = vector.multi_reduction <maximumf>, %4, %cst_5 [1] : vector<8x128xf32> to vector<8xf32>
    %13 = vector.shape_cast %12 : vector<8xf32> to vector<8x1xf32>
    %14 = vector.broadcast %13 : vector<8x1xf32> to vector<8x128xf32>
    %15 = arith.subf %4, %14 : vector<8x128xf32>
    %16 = math.exp %15 : vector<8x128xf32>
    %cst_6 = arith.constant dense<0.000000e+00> : vector<8xf32>
    %17 = vector.multi_reduction <add>, %16, %cst_6 [1] : vector<8x128xf32> to vector<8xf32>
    %18 = vector.shape_cast %17 : vector<8xf32> to vector<8x1xf32>
    %19 = arith.mulf %16, %15 : vector<8x128xf32>
    %cst_7 = arith.constant dense<0.000000e+00> : vector<8xf32>
    %20 = vector.multi_reduction <add>, %19, %cst_7 [1] : vector<8x128xf32> to vector<8xf32>
    %21 = vector.shape_cast %20 : vector<8xf32> to vector<8x1xf32>
    %cst_8 = arith.constant 0.00999999977 : f32
    %22 = vector.broadcast %cst_8 : f32 to vector<8x128xf32>
    %23 = arith.cmpf olt, %4, %22 : vector<8x128xf32>
    %24 = arith.extui %23 : vector<8x128xi1> to vector<8x128xi32>
    %25 = arith.sitofp %24 : vector<8x128xi32> to vector<8x128xf32>
    %cst_9 = arith.constant dense<0.000000e+00> : vector<8xf32>
    %26 = vector.multi_reduction <add>, %25, %cst_9 [1] : vector<8x128xf32> to vector<8xf32>
    %27 = vector.shape_cast %26 : vector<8xf32> to vector<8x1xf32>
    %28 = math.absf %1 : vector<8x128xf32>
    %cst_10 = arith.constant dense<0.000000e+00> : vector<8xf32>
    %29 = vector.multi_reduction <add>, %1, %cst_10 [1] : vector<8x128xf32> to vector<8xf32>
    %30 = vector.shape_cast %29 : vector<8xf32> to vector<8x1xf32>
    %31 = arith.mulf %1, %1 : vector<8x128xf32>
    %cst_11 = arith.constant dense<0.000000e+00> : vector<8xf32>
    %32 = vector.multi_reduction <add>, %31, %cst_11 [1] : vector<8x128xf32> to vector<8xf32>
    %33 = vector.shape_cast %32 : vector<8xf32> to vector<8x1xf32>
    %cst_12 = arith.constant dense<0.000000e+00> : vector<8xf32>
    %34 = vector.multi_reduction <add>, %28, %cst_12 [1] : vector<8x128xf32> to vector<8xf32>
    %35 = vector.shape_cast %34 : vector<8xf32> to vector<8x1xf32>
    %cst_13 = arith.constant dense<0xFF800000> : vector<8xf32>
    %36 = vector.multi_reduction <maximumf>, %28, %cst_13 [1] : vector<8x128xf32> to vector<8xf32>
    %37 = vector.shape_cast %36 : vector<8xf32> to vector<8x1xf32>
    %38 = vector.broadcast %37 : vector<8x1xf32> to vector<8x128xf32>
    %39 = arith.subf %28, %38 : vector<8x128xf32>
    %40 = math.exp %39 : vector<8x128xf32>
    %cst_14 = arith.constant dense<0.000000e+00> : vector<8xf32>
    %41 = vector.multi_reduction <add>, %40, %cst_14 [1] : vector<8x128xf32> to vector<8xf32>
    %42 = vector.shape_cast %41 : vector<8xf32> to vector<8x1xf32>
    %43 = arith.mulf %40, %39 : vector<8x128xf32>
    %cst_15 = arith.constant dense<0.000000e+00> : vector<8xf32>
    %44 = vector.multi_reduction <add>, %43, %cst_15 [1] : vector<8x128xf32> to vector<8xf32>
    %45 = vector.shape_cast %44 : vector<8xf32> to vector<8x1xf32>
    %cst_16 = arith.constant 0.00999999977 : f32
    %46 = vector.broadcast %cst_16 : f32 to vector<8x128xf32>
    %47 = arith.cmpf olt, %28, %46 : vector<8x128xf32>
    %48 = arith.extui %47 : vector<8x128xi1> to vector<8x128xi32>
    %49 = arith.sitofp %48 : vector<8x128xi32> to vector<8x128xf32>
    %cst_17 = arith.constant dense<0.000000e+00> : vector<8xf32>
    %50 = vector.multi_reduction <add>, %49, %cst_17 [1] : vector<8x128xf32> to vector<8xf32>
    %51 = vector.shape_cast %50 : vector<8xf32> to vector<8x1xf32>
    %52 = arith.mulf %0, %1 : vector<8x128xf32>
    %cst_18 = arith.constant dense<0.000000e+00> : vector<8xf32>
    %53 = vector.multi_reduction <add>, %52, %cst_18 [1] : vector<8x128xf32> to vector<8xf32>
    %54 = vector.shape_cast %53 : vector<8xf32> to vector<8x1xf32>
    %55 = math.sqrt %9 : vector<8x1xf32>
    %cst_19 = arith.constant 11.3137083 : f32
    %56 = vector.broadcast %cst_19 : f32 to vector<8x1xf32>
    %57 = arith.subf %55, %56 : vector<8x1xf32>
    %58 = math.absf %57 : vector<8x1xf32>
    %cst_20 = arith.constant 0.000000e+00 : f32
    %59 = vector.broadcast %cst_20 : f32 to vector<8x1xf32>
    %60 = arith.subf %59, %58 : vector<8x1xf32>
    %cst_21 = arith.constant 11.3137083 : f32
    %61 = vector.broadcast %cst_21 : f32 to vector<8x1xf32>
    %62 = arith.divf %60, %61 : vector<8x1xf32>
    %63 = math.exp %62 : vector<8x1xf32>
    %64 = math.log %18 : vector<8x1xf32>
    %65 = arith.divf %21, %18 : vector<8x1xf32>
    %66 = arith.subf %64, %65 : vector<8x1xf32>
    %cst_22 = arith.constant 4.85203028 : f32
    %67 = vector.broadcast %cst_22 : f32 to vector<8x1xf32>
    %68 = arith.divf %66, %67 : vector<8x1xf32>
    %69 = arith.mulf %6, %6 : vector<8x1xf32>
    %cst_23 = arith.constant 1.280000e+02 : f32
    %70 = vector.broadcast %cst_23 : f32 to vector<8x1xf32>
    %71 = arith.divf %69, %70 : vector<8x1xf32>
    %72 = arith.subf %9, %71 : vector<8x1xf32>
    %cst_24 = arith.constant 1.270000e+02 : f32
    %73 = vector.broadcast %cst_24 : f32 to vector<8x1xf32>
    %74 = arith.divf %72, %73 : vector<8x1xf32>
    %cst_25 = arith.constant 1.280000e+02 : f32
    %75 = vector.broadcast %cst_25 : f32 to vector<8x1xf32>
    %76 = arith.divf %11, %75 : vector<8x1xf32>
    %cst_26 = arith.constant 9.99999968E-21 : f32
    %77 = vector.broadcast %cst_26 : f32 to vector<8x1xf32>
    %78 = arith.maximumf %76, %77 : vector<8x1xf32>
    %79 = arith.divf %74, %78 : vector<8x1xf32>
    %80 = arith.negf %79 : vector<8x1xf32>
    %81 = math.exp %80 : vector<8x1xf32>
    %cst_27 = arith.constant 1.000000e+00 : f32
    %82 = vector.broadcast %cst_27 : f32 to vector<8x1xf32>
    %83 = arith.addf %82, %81 : vector<8x1xf32>
    %84 = arith.divf %82, %83 : vector<8x1xf32>
    %cst_28 = arith.constant 1.280000e+02 : f32
    %85 = vector.broadcast %cst_28 : f32 to vector<8x1xf32>
    %86 = arith.divf %27, %85 : vector<8x1xf32>
    %cst_29 = arith.constant 1.000000e-01 : f32
    %87 = vector.broadcast %cst_29 : f32 to vector<8x1xf32>
    %88 = arith.subf %86, %87 : vector<8x1xf32>
    %89 = math.absf %88 : vector<8x1xf32>
    %cst_30 = arith.constant 0.000000e+00 : f32
    %90 = vector.broadcast %cst_30 : f32 to vector<8x1xf32>
    %91 = arith.subf %90, %89 : vector<8x1xf32>
    %cst_31 = arith.constant 1.000000e-01 : f32
    %92 = vector.broadcast %cst_31 : f32 to vector<8x1xf32>
    %93 = arith.divf %91, %92 : vector<8x1xf32>
    %94 = math.exp %93 : vector<8x1xf32>
    %95 = math.sqrt %33 : vector<8x1xf32>
    %cst_32 = arith.constant 11.3137083 : f32
    %96 = vector.broadcast %cst_32 : f32 to vector<8x1xf32>
    %97 = arith.subf %95, %96 : vector<8x1xf32>
    %98 = math.absf %97 : vector<8x1xf32>
    %cst_33 = arith.constant 0.000000e+00 : f32
    %99 = vector.broadcast %cst_33 : f32 to vector<8x1xf32>
    %100 = arith.subf %99, %98 : vector<8x1xf32>
    %cst_34 = arith.constant 11.3137083 : f32
    %101 = vector.broadcast %cst_34 : f32 to vector<8x1xf32>
    %102 = arith.divf %100, %101 : vector<8x1xf32>
    %103 = math.exp %102 : vector<8x1xf32>
    %104 = math.log %42 : vector<8x1xf32>
    %105 = arith.divf %45, %42 : vector<8x1xf32>
    %106 = arith.subf %104, %105 : vector<8x1xf32>
    %cst_35 = arith.constant 4.85203028 : f32
    %107 = vector.broadcast %cst_35 : f32 to vector<8x1xf32>
    %108 = arith.divf %106, %107 : vector<8x1xf32>
    %109 = arith.mulf %30, %30 : vector<8x1xf32>
    %cst_36 = arith.constant 1.280000e+02 : f32
    %110 = vector.broadcast %cst_36 : f32 to vector<8x1xf32>
    %111 = arith.divf %109, %110 : vector<8x1xf32>
    %112 = arith.subf %33, %111 : vector<8x1xf32>
    %cst_37 = arith.constant 1.270000e+02 : f32
    %113 = vector.broadcast %cst_37 : f32 to vector<8x1xf32>
    %114 = arith.divf %112, %113 : vector<8x1xf32>
    %cst_38 = arith.constant 1.280000e+02 : f32
    %115 = vector.broadcast %cst_38 : f32 to vector<8x1xf32>
    %116 = arith.divf %35, %115 : vector<8x1xf32>
    %cst_39 = arith.constant 9.99999968E-21 : f32
    %117 = vector.broadcast %cst_39 : f32 to vector<8x1xf32>
    %118 = arith.maximumf %116, %117 : vector<8x1xf32>
    %119 = arith.divf %114, %118 : vector<8x1xf32>
    %120 = arith.negf %119 : vector<8x1xf32>
    %121 = math.exp %120 : vector<8x1xf32>
    %cst_40 = arith.constant 1.000000e+00 : f32
    %122 = vector.broadcast %cst_40 : f32 to vector<8x1xf32>
    %123 = arith.addf %122, %121 : vector<8x1xf32>
    %124 = arith.divf %122, %123 : vector<8x1xf32>
    %cst_41 = arith.constant 1.280000e+02 : f32
    %125 = vector.broadcast %cst_41 : f32 to vector<8x1xf32>
    %126 = arith.divf %51, %125 : vector<8x1xf32>
    %cst_42 = arith.constant 1.000000e-01 : f32
    %127 = vector.broadcast %cst_42 : f32 to vector<8x1xf32>
    %128 = arith.subf %126, %127 : vector<8x1xf32>
    %129 = math.absf %128 : vector<8x1xf32>
    %cst_43 = arith.constant 0.000000e+00 : f32
    %130 = vector.broadcast %cst_43 : f32 to vector<8x1xf32>
    %131 = arith.subf %130, %129 : vector<8x1xf32>
    %cst_44 = arith.constant 1.000000e-01 : f32
    %132 = vector.broadcast %cst_44 : f32 to vector<8x1xf32>
    %133 = arith.divf %131, %132 : vector<8x1xf32>
    %134 = math.exp %133 : vector<8x1xf32>
    %cst_45 = arith.constant 9.99999993E-9 : f32
    %135 = vector.broadcast %cst_45 : f32 to vector<8x1xf32>
    %136 = arith.maximumf %55, %135 : vector<8x1xf32>
    %cst_46 = arith.constant 9.99999993E-9 : f32
    %137 = vector.broadcast %cst_46 : f32 to vector<8x1xf32>
    %138 = arith.maximumf %95, %137 : vector<8x1xf32>
    %139 = arith.mulf %136, %138 : vector<8x1xf32>
    %140 = arith.divf %54, %139 : vector<8x1xf32>
    %cst_47 = arith.constant 1.000000e+00 : f32
    %141 = vector.broadcast %cst_47 : f32 to vector<8x1xf32>
    %142 = arith.addf %140, %141 : vector<8x1xf32>
    %cst_48 = arith.constant 5.000000e-01 : f32
    %143 = vector.broadcast %cst_48 : f32 to vector<8x1xf32>
    %144 = arith.mulf %142, %143 : vector<8x1xf32>
    %145 = arith.mulf %6, %30 : vector<8x1xf32>
    %cst_49 = arith.constant 1.280000e+02 : f32
    %146 = vector.broadcast %cst_49 : f32 to vector<8x1xf32>
    %147 = arith.divf %145, %146 : vector<8x1xf32>
    %148 = arith.subf %54, %147 : vector<8x1xf32>
    %149 = arith.mulf %6, %6 : vector<8x1xf32>
    %cst_50 = arith.constant 1.280000e+02 : f32
    %150 = vector.broadcast %cst_50 : f32 to vector<8x1xf32>
    %151 = arith.divf %149, %150 : vector<8x1xf32>
    %152 = arith.subf %9, %151 : vector<8x1xf32>
    %153 = arith.mulf %30, %30 : vector<8x1xf32>
    %cst_51 = arith.constant 1.280000e+02 : f32
    %154 = vector.broadcast %cst_51 : f32 to vector<8x1xf32>
    %155 = arith.divf %153, %154 : vector<8x1xf32>
    %156 = arith.subf %33, %155 : vector<8x1xf32>
    %157 = arith.mulf %148, %148 : vector<8x1xf32>
    %158 = arith.mulf %152, %156 : vector<8x1xf32>
    %cst_52 = arith.constant 9.99999993E-9 : f32
    %159 = vector.broadcast %cst_52 : f32 to vector<8x1xf32>
    %160 = arith.addf %158, %159 : vector<8x1xf32>
    %161 = arith.divf %157, %160 : vector<8x1xf32>
    %162 = arith.addf %9, %33 : vector<8x1xf32>
    %cst_53 = arith.constant 2.000000e+00 : f32
    %163 = vector.broadcast %cst_53 : f32 to vector<8x1xf32>
    %164 = arith.mulf %163, %54 : vector<8x1xf32>
    %165 = arith.subf %162, %164 : vector<8x1xf32>
    %cst_54 = arith.constant 0.000000e+00 : f32
    %166 = vector.broadcast %cst_54 : f32 to vector<8x1xf32>
    %167 = arith.maximumf %165, %166 : vector<8x1xf32>
    %168 = math.sqrt %167 : vector<8x1xf32>
    %169 = arith.addf %55, %95 : vector<8x1xf32>
    %cst_55 = arith.constant 9.99999993E-9 : f32
    %170 = vector.broadcast %cst_55 : f32 to vector<8x1xf32>
    %171 = arith.addf %169, %170 : vector<8x1xf32>
    %172 = arith.divf %168, %171 : vector<8x1xf32>
    %cst_56 = arith.constant 1.000000e+00 : f32
    %173 = vector.broadcast %cst_56 : f32 to vector<8x1xf32>
    %174 = arith.subf %173, %172 : vector<8x1xf32>
    %c0_57 = arith.constant 0 : index
    %c0_58 = arith.constant 0 : index
    %175 = vector.load %arg3[%c0_57, %c0_58] : memref<128x192xbf16, #tpu.memory_space<vmem>>, vector<128x192xbf16>
    %cst_59 = arith.constant dense<0.000000e+00> : vector<8x192xf32>
    %176 = tpu.matmul %2, %175, %cst_59 {dimension_numbers = #tpu.dot_dimension_numbers<[1], [0], [0], [1], [0, 0, 1, 1], [], []>} : vector<8x128xbf16>, vector<128x192xbf16>, vector<8x192xf32> -> vector<8x192xf32>
    %c0_60 = arith.constant 0 : index
    %c0_61 = arith.constant 0 : index
    %177 = vector.load %arg9[%c0_60, %c0_61] : memref<128x192xbf16, #tpu.memory_space<vmem>>, vector<128x192xbf16>
    %cst_62 = arith.constant dense<0.000000e+00> : vector<8x192xf32>
    %178 = tpu.matmul %3, %177, %cst_62 {dimension_numbers = #tpu.dot_dimension_numbers<[1], [0], [0], [1], [0, 0, 1, 1], [], []>} : vector<8x128xbf16>, vector<128x192xbf16>, vector<8x192xf32> -> vector<8x192xf32>
    %179 = vector.extract_strided_slice %176 {offsets = [0, 0], sizes = [8, 128], strides = [1, 1]} : vector<8x192xf32> to vector<8x128xf32>
    %180 = vector.extract_strided_slice %178 {offsets = [0, 0], sizes = [8, 128], strides = [1, 1]} : vector<8x192xf32> to vector<8x128xf32>
    %181 = vector.extract_strided_slice %176 {offsets = [0, 128], sizes = [8, 64], strides = [1, 1]} : vector<8x192xf32> to vector<8x64xf32>
    %182 = vector.extract_strided_slice %178 {offsets = [0, 128], sizes = [8, 64], strides = [1, 1]} : vector<8x192xf32> to vector<8x64xf32>
    %c0_63 = arith.constant 0 : index
    %c0_64 = arith.constant 0 : index
    %183 = vector.load %arg4[%c0_63, %c0_64] : memref<1x64xf32, #tpu.memory_space<vmem>>, vector<1x64xf32>
    %184 = vector.broadcast %183 : vector<1x64xf32> to vector<8x64xf32>
    %185 = arith.addf %181, %184 : vector<8x64xf32>
    %cst_65 = arith.constant 0.000000e+00 : f32
    %186 = vector.broadcast %cst_65 : f32 to vector<8x64xf32>
    %187 = arith.maximumf %185, %186 : vector<8x64xf32>
    %188 = arith.truncf %187 : vector<8x64xf32> to vector<8x64xbf16>
    %c0_66 = arith.constant 0 : index
    %c0_67 = arith.constant 0 : index
    %189 = vector.load %arg5[%c0_66, %c0_67] : memref<64x32xbf16, #tpu.memory_space<vmem>>, vector<64x32xbf16>
    %cst_68 = arith.constant dense<0.000000e+00> : vector<8x32xf32>
    %190 = tpu.matmul %188, %189, %cst_68 {dimension_numbers = #tpu.dot_dimension_numbers<[1], [0], [0], [1], [0, 0, 1, 1], [], []>} : vector<8x64xbf16>, vector<64x32xbf16>, vector<8x32xf32> -> vector<8x32xf32>
    %c0_69 = arith.constant 0 : index
    %c0_70 = arith.constant 0 : index
    %191 = vector.load %arg6[%c0_69, %c0_70] : memref<1x32xf32, #tpu.memory_space<vmem>>, vector<1x32xf32>
    %192 = vector.broadcast %191 : vector<1x32xf32> to vector<8x32xf32>
    %193 = arith.addf %190, %192 : vector<8x32xf32>
    %cst_71 = arith.constant 0.000000e+00 : f32
    %194 = vector.broadcast %cst_71 : f32 to vector<8x32xf32>
    %195 = arith.maximumf %193, %194 : vector<8x32xf32>
    %c0_72 = arith.constant 0 : index
    %c0_73 = arith.constant 0 : index
    %196 = vector.load %arg7[%c0_72, %c0_73] : memref<1x32xf32, #tpu.memory_space<vmem>>, vector<1x32xf32>
    %197 = vector.broadcast %196 : vector<1x32xf32> to vector<8x32xf32>
    %198 = arith.mulf %195, %197 : vector<8x32xf32>
    %cst_74 = arith.constant dense<0.000000e+00> : vector<8xf32>
    %199 = vector.multi_reduction <add>, %198, %cst_74 [1] : vector<8x32xf32> to vector<8xf32>
    %200 = vector.shape_cast %199 : vector<8xf32> to vector<8x1xf32>
    %c0_75 = arith.constant 0 : index
    %c0_76 = arith.constant 0 : index
    %201 = vector.load %arg8[%c0_75, %c0_76] : memref<1x1xf32, #tpu.memory_space<vmem>>, vector<1x1xf32>
    %202 = vector.broadcast %201 : vector<1x1xf32> to vector<8x1xf32>
    %203 = arith.addf %200, %202 : vector<8x1xf32>
    %204 = arith.negf %203 : vector<8x1xf32>
    %205 = math.exp %204 : vector<8x1xf32>
    %cst_77 = arith.constant 1.000000e+00 : f32
    %206 = vector.broadcast %cst_77 : f32 to vector<8x1xf32>
    %207 = arith.addf %206, %205 : vector<8x1xf32>
    %208 = arith.divf %206, %207 : vector<8x1xf32>
    %c0_78 = arith.constant 0 : index
    %c0_79 = arith.constant 0 : index
    %209 = vector.load %arg10[%c0_78, %c0_79] : memref<1x64xf32, #tpu.memory_space<vmem>>, vector<1x64xf32>
    %210 = vector.broadcast %209 : vector<1x64xf32> to vector<8x64xf32>
    %211 = arith.addf %182, %210 : vector<8x64xf32>
    %cst_80 = arith.constant 0.000000e+00 : f32
    %212 = vector.broadcast %cst_80 : f32 to vector<8x64xf32>
    %213 = arith.maximumf %211, %212 : vector<8x64xf32>
    %214 = arith.truncf %213 : vector<8x64xf32> to vector<8x64xbf16>
    %c0_81 = arith.constant 0 : index
    %c0_82 = arith.constant 0 : index
    %215 = vector.load %arg11[%c0_81, %c0_82] : memref<64x32xbf16, #tpu.memory_space<vmem>>, vector<64x32xbf16>
    %cst_83 = arith.constant dense<0.000000e+00> : vector<8x32xf32>
    %216 = tpu.matmul %214, %215, %cst_83 {dimension_numbers = #tpu.dot_dimension_numbers<[1], [0], [0], [1], [0, 0, 1, 1], [], []>} : vector<8x64xbf16>, vector<64x32xbf16>, vector<8x32xf32> -> vector<8x32xf32>
    %c0_84 = arith.constant 0 : index
    %c0_85 = arith.constant 0 : index
    %217 = vector.load %arg12[%c0_84, %c0_85] : memref<1x32xf32, #tpu.memory_space<vmem>>, vector<1x32xf32>
    %218 = vector.broadcast %217 : vector<1x32xf32> to vector<8x32xf32>
    %219 = arith.addf %216, %218 : vector<8x32xf32>
    %cst_86 = arith.constant 0.000000e+00 : f32
    %220 = vector.broadcast %cst_86 : f32 to vector<8x32xf32>
    %221 = arith.maximumf %219, %220 : vector<8x32xf32>
    %c0_87 = arith.constant 0 : index
    %c0_88 = arith.constant 0 : index
    %222 = vector.load %arg13[%c0_87, %c0_88] : memref<1x32xf32, #tpu.memory_space<vmem>>, vector<1x32xf32>
    %223 = vector.broadcast %222 : vector<1x32xf32> to vector<8x32xf32>
    %224 = arith.mulf %221, %223 : vector<8x32xf32>
    %cst_89 = arith.constant dense<0.000000e+00> : vector<8xf32>
    %225 = vector.multi_reduction <add>, %224, %cst_89 [1] : vector<8x32xf32> to vector<8xf32>
    %226 = vector.shape_cast %225 : vector<8xf32> to vector<8x1xf32>
    %c0_90 = arith.constant 0 : index
    %c0_91 = arith.constant 0 : index
    %227 = vector.load %arg14[%c0_90, %c0_91] : memref<1x1xf32, #tpu.memory_space<vmem>>, vector<1x1xf32>
    %228 = vector.broadcast %227 : vector<1x1xf32> to vector<8x1xf32>
    %229 = arith.addf %226, %228 : vector<8x1xf32>
    %230 = arith.negf %229 : vector<8x1xf32>
    %231 = math.exp %230 : vector<8x1xf32>
    %cst_92 = arith.constant 1.000000e+00 : f32
    %232 = vector.broadcast %cst_92 : f32 to vector<8x1xf32>
    %233 = arith.addf %232, %231 : vector<8x1xf32>
    %234 = arith.divf %232, %233 : vector<8x1xf32>
    %235 = arith.addf %179, %180 : vector<8x128xf32>
    %c0_93 = arith.constant 0 : index
    %c0_94 = arith.constant 0 : index
    %236 = vector.load %arg15[%c0_93, %c0_94] : memref<1x128xf32, #tpu.memory_space<vmem>>, vector<1x128xf32>
    %237 = vector.broadcast %236 : vector<1x128xf32> to vector<8x128xf32>
    %238 = arith.addf %235, %237 : vector<8x128xf32>
    %cst_95 = arith.constant 0.000000e+00 : f32
    %239 = vector.broadcast %cst_95 : f32 to vector<8x128xf32>
    %240 = arith.maximumf %238, %239 : vector<8x128xf32>
    %241 = arith.truncf %240 : vector<8x128xf32> to vector<8x128xbf16>
    %c0_96 = arith.constant 0 : index
    %c0_97 = arith.constant 0 : index
    %242 = vector.load %arg16[%c0_96, %c0_97] : memref<128x64xbf16, #tpu.memory_space<vmem>>, vector<128x64xbf16>
    %cst_98 = arith.constant dense<0.000000e+00> : vector<8x64xf32>
    %243 = tpu.matmul %241, %242, %cst_98 {dimension_numbers = #tpu.dot_dimension_numbers<[1], [0], [0], [1], [0, 0, 1, 1], [], []>} : vector<8x128xbf16>, vector<128x64xbf16>, vector<8x64xf32> -> vector<8x64xf32>
    %c0_99 = arith.constant 0 : index
    %c0_100 = arith.constant 0 : index
    %244 = vector.load %arg17[%c0_99, %c0_100] : memref<1x64xf32, #tpu.memory_space<vmem>>, vector<1x64xf32>
    %245 = vector.broadcast %244 : vector<1x64xf32> to vector<8x64xf32>
    %246 = arith.addf %243, %245 : vector<8x64xf32>
    %cst_101 = arith.constant 0.000000e+00 : f32
    %247 = vector.broadcast %cst_101 : f32 to vector<8x64xf32>
    %248 = arith.maximumf %246, %247 : vector<8x64xf32>
    %c0_102 = arith.constant 0 : index
    %c0_103 = arith.constant 0 : index
    %249 = vector.load %arg18[%c0_102, %c0_103] : memref<1x64xf32, #tpu.memory_space<vmem>>, vector<1x64xf32>
    %250 = vector.broadcast %249 : vector<1x64xf32> to vector<8x64xf32>
    %251 = arith.mulf %248, %250 : vector<8x64xf32>
    %cst_104 = arith.constant dense<0.000000e+00> : vector<8xf32>
    %252 = vector.multi_reduction <add>, %251, %cst_104 [1] : vector<8x64xf32> to vector<8xf32>
    %253 = vector.shape_cast %252 : vector<8xf32> to vector<8x1xf32>
    %c0_105 = arith.constant 0 : index
    %c0_106 = arith.constant 0 : index
    %254 = vector.load %arg19[%c0_105, %c0_106] : memref<1x1xf32, #tpu.memory_space<vmem>>, vector<1x1xf32>
    %255 = vector.broadcast %254 : vector<1x1xf32> to vector<8x1xf32>
    %256 = arith.addf %253, %255 : vector<8x1xf32>
    %257 = arith.negf %256 : vector<8x1xf32>
    %258 = math.exp %257 : vector<8x1xf32>
    %cst_107 = arith.constant 1.000000e+00 : f32
    %259 = vector.broadcast %cst_107 : f32 to vector<8x1xf32>
    %260 = arith.addf %259, %258 : vector<8x1xf32>
    %261 = arith.divf %259, %260 : vector<8x1xf32>
    %c0_108 = arith.constant 0 : index
    %c0_109 = arith.constant 0 : index
    %262 = vector.load %arg20[%c0_108, %c0_109] : memref<8x16xf32, #tpu.memory_space<vmem>>, vector<8x16xf32>
    %c0_110 = arith.constant 0 : index
    %c0_111 = arith.constant 0 : index
    %263 = vector.load %arg21[%c0_110, %c0_111] : memref<1x16xf32, #tpu.memory_space<vmem>>, vector<1x16xf32>
    %264 = vector.extract_strided_slice %262 {offsets = [0, 0], sizes = [1, 16], strides = [1, 1]} : vector<8x16xf32> to vector<1x16xf32>
    %265 = vector.broadcast %63 : vector<8x1xf32> to vector<8x16xf32>
    %266 = vector.broadcast %264 : vector<1x16xf32> to vector<8x16xf32>
    %267 = arith.mulf %265, %266 : vector<8x16xf32>
    %268 = vector.broadcast %263 : vector<1x16xf32> to vector<8x16xf32>
    %269 = arith.addf %268, %267 : vector<8x16xf32>
    %270 = vector.extract_strided_slice %262 {offsets = [1, 0], sizes = [1, 16], strides = [1, 1]} : vector<8x16xf32> to vector<1x16xf32>
    %271 = vector.broadcast %68 : vector<8x1xf32> to vector<8x16xf32>
    %272 = vector.broadcast %270 : vector<1x16xf32> to vector<8x16xf32>
    %273 = arith.mulf %271, %272 : vector<8x16xf32>
    %274 = arith.addf %269, %273 : vector<8x16xf32>
    %275 = vector.extract_strided_slice %262 {offsets = [2, 0], sizes = [1, 16], strides = [1, 1]} : vector<8x16xf32> to vector<1x16xf32>
    %276 = vector.broadcast %103 : vector<8x1xf32> to vector<8x16xf32>
    %277 = vector.broadcast %275 : vector<1x16xf32> to vector<8x16xf32>
    %278 = arith.mulf %276, %277 : vector<8x16xf32>
    %279 = arith.addf %274, %278 : vector<8x16xf32>
    %280 = vector.extract_strided_slice %262 {offsets = [3, 0], sizes = [1, 16], strides = [1, 1]} : vector<8x16xf32> to vector<1x16xf32>
    %281 = vector.broadcast %108 : vector<8x1xf32> to vector<8x16xf32>
    %282 = vector.broadcast %280 : vector<1x16xf32> to vector<8x16xf32>
    %283 = arith.mulf %281, %282 : vector<8x16xf32>
    %284 = arith.addf %279, %283 : vector<8x16xf32>
    %285 = vector.extract_strided_slice %262 {offsets = [4, 0], sizes = [1, 16], strides = [1, 1]} : vector<8x16xf32> to vector<1x16xf32>
    %286 = vector.broadcast %144 : vector<8x1xf32> to vector<8x16xf32>
    %287 = vector.broadcast %285 : vector<1x16xf32> to vector<8x16xf32>
    %288 = arith.mulf %286, %287 : vector<8x16xf32>
    %289 = arith.addf %284, %288 : vector<8x16xf32>
    %290 = vector.extract_strided_slice %262 {offsets = [5, 0], sizes = [1, 16], strides = [1, 1]} : vector<8x16xf32> to vector<1x16xf32>
    %291 = vector.broadcast %208 : vector<8x1xf32> to vector<8x16xf32>
    %292 = vector.broadcast %290 : vector<1x16xf32> to vector<8x16xf32>
    %293 = arith.mulf %291, %292 : vector<8x16xf32>
    %294 = arith.addf %289, %293 : vector<8x16xf32>
    %295 = vector.extract_strided_slice %262 {offsets = [6, 0], sizes = [1, 16], strides = [1, 1]} : vector<8x16xf32> to vector<1x16xf32>
    %296 = vector.broadcast %234 : vector<8x1xf32> to vector<8x16xf32>
    %297 = vector.broadcast %295 : vector<1x16xf32> to vector<8x16xf32>
    %298 = arith.mulf %296, %297 : vector<8x16xf32>
    %299 = arith.addf %294, %298 : vector<8x16xf32>
    %300 = vector.extract_strided_slice %262 {offsets = [7, 0], sizes = [1, 16], strides = [1, 1]} : vector<8x16xf32> to vector<1x16xf32>
    %301 = vector.broadcast %261 : vector<8x1xf32> to vector<8x16xf32>
    %302 = vector.broadcast %300 : vector<1x16xf32> to vector<8x16xf32>
    %303 = arith.mulf %301, %302 : vector<8x16xf32>
    %304 = arith.addf %299, %303 : vector<8x16xf32>
    %cst_112 = arith.constant 0.000000e+00 : f32
    %305 = vector.broadcast %cst_112 : f32 to vector<8x16xf32>
    %306 = arith.maximumf %304, %305 : vector<8x16xf32>
    %c0_113 = arith.constant 0 : index
    %c0_114 = arith.constant 0 : index
    %307 = vector.load %arg22[%c0_113, %c0_114] : memref<4x16xf32, #tpu.memory_space<vmem>>, vector<4x16xf32>
    %c0_115 = arith.constant 0 : index
    %c0_116 = arith.constant 0 : index
    %308 = vector.load %arg23[%c0_115, %c0_116] : memref<4x1xf32, #tpu.memory_space<vmem>>, vector<4x1xf32>
    %309 = vector.extract_strided_slice %307 {offsets = [0, 0], sizes = [1, 16], strides = [1, 1]} : vector<4x16xf32> to vector<1x16xf32>
    %310 = vector.broadcast %309 : vector<1x16xf32> to vector<8x16xf32>
    %311 = arith.mulf %306, %310 : vector<8x16xf32>
    %cst_117 = arith.constant dense<0.000000e+00> : vector<8xf32>
    %312 = vector.multi_reduction <add>, %311, %cst_117 [1] : vector<8x16xf32> to vector<8xf32>
    %313 = vector.shape_cast %312 : vector<8xf32> to vector<8x1xf32>
    %314 = vector.extract_strided_slice %308 {offsets = [0, 0], sizes = [1, 1], strides = [1, 1]} : vector<4x1xf32> to vector<1x1xf32>
    %315 = vector.broadcast %314 : vector<1x1xf32> to vector<8x1xf32>
    %316 = arith.addf %313, %315 : vector<8x1xf32>
    %317 = arith.negf %316 : vector<8x1xf32>
    %318 = math.exp %317 : vector<8x1xf32>
    %cst_118 = arith.constant 1.000000e+00 : f32
    %319 = vector.broadcast %cst_118 : f32 to vector<8x1xf32>
    %320 = arith.addf %319, %318 : vector<8x1xf32>
    %321 = arith.divf %319, %320 : vector<8x1xf32>
    %322 = vector.extract_strided_slice %307 {offsets = [1, 0], sizes = [1, 16], strides = [1, 1]} : vector<4x16xf32> to vector<1x16xf32>
    %323 = vector.broadcast %322 : vector<1x16xf32> to vector<8x16xf32>
    %324 = arith.mulf %306, %323 : vector<8x16xf32>
    %cst_119 = arith.constant dense<0.000000e+00> : vector<8xf32>
    %325 = vector.multi_reduction <add>, %324, %cst_119 [1] : vector<8x16xf32> to vector<8xf32>
    %326 = vector.shape_cast %325 : vector<8xf32> to vector<8x1xf32>
    %327 = vector.extract_strided_slice %308 {offsets = [1, 0], sizes = [1, 1], strides = [1, 1]} : vector<4x1xf32> to vector<1x1xf32>
    %328 = vector.broadcast %327 : vector<1x1xf32> to vector<8x1xf32>
    %329 = arith.addf %326, %328 : vector<8x1xf32>
    %330 = arith.negf %329 : vector<8x1xf32>
    %331 = math.exp %330 : vector<8x1xf32>
    %cst_120 = arith.constant 1.000000e+00 : f32
    %332 = vector.broadcast %cst_120 : f32 to vector<8x1xf32>
    %333 = arith.addf %332, %331 : vector<8x1xf32>
    %334 = arith.divf %332, %333 : vector<8x1xf32>
    %335 = vector.extract_strided_slice %307 {offsets = [2, 0], sizes = [1, 16], strides = [1, 1]} : vector<4x16xf32> to vector<1x16xf32>
    %336 = vector.broadcast %335 : vector<1x16xf32> to vector<8x16xf32>
    %337 = arith.mulf %306, %336 : vector<8x16xf32>
    %cst_121 = arith.constant dense<0.000000e+00> : vector<8xf32>
    %338 = vector.multi_reduction <add>, %337, %cst_121 [1] : vector<8x16xf32> to vector<8xf32>
    %339 = vector.shape_cast %338 : vector<8xf32> to vector<8x1xf32>
    %340 = vector.extract_strided_slice %308 {offsets = [2, 0], sizes = [1, 1], strides = [1, 1]} : vector<4x1xf32> to vector<1x1xf32>
    %341 = vector.broadcast %340 : vector<1x1xf32> to vector<8x1xf32>
    %342 = arith.addf %339, %341 : vector<8x1xf32>
    %343 = arith.negf %342 : vector<8x1xf32>
    %344 = math.exp %343 : vector<8x1xf32>
    %cst_122 = arith.constant 1.000000e+00 : f32
    %345 = vector.broadcast %cst_122 : f32 to vector<8x1xf32>
    %346 = arith.addf %345, %344 : vector<8x1xf32>
    %347 = arith.divf %345, %346 : vector<8x1xf32>
    %348 = vector.extract_strided_slice %307 {offsets = [3, 0], sizes = [1, 16], strides = [1, 1]} : vector<4x16xf32> to vector<1x16xf32>
    %349 = vector.broadcast %348 : vector<1x16xf32> to vector<8x16xf32>
    %350 = arith.mulf %306, %349 : vector<8x16xf32>
    %cst_123 = arith.constant dense<0.000000e+00> : vector<8xf32>
    %351 = vector.multi_reduction <add>, %350, %cst_123 [1] : vector<8x16xf32> to vector<8xf32>
    %352 = vector.shape_cast %351 : vector<8xf32> to vector<8x1xf32>
    %353 = vector.extract_strided_slice %308 {offsets = [3, 0], sizes = [1, 1], strides = [1, 1]} : vector<4x1xf32> to vector<1x1xf32>
    %354 = vector.broadcast %353 : vector<1x1xf32> to vector<8x1xf32>
    %355 = arith.addf %352, %354 : vector<8x1xf32>
    %356 = arith.negf %355 : vector<8x1xf32>
    %357 = math.exp %356 : vector<8x1xf32>
    %cst_124 = arith.constant 1.000000e+00 : f32
    %358 = vector.broadcast %cst_124 : f32 to vector<8x1xf32>
    %359 = arith.addf %358, %357 : vector<8x1xf32>
    %360 = arith.divf %358, %359 : vector<8x1xf32>
    %361 = tpu.iota {dimensions = array<i32: 1>} : vector<8x128xi32>
    %cst_125 = arith.constant 0.000000e+00 : f32
    %362 = vector.broadcast %cst_125 : f32 to vector<8x128xf32>
    %c0_i32 = arith.constant 0 : i32
    %363 = vector.broadcast %c0_i32 : i32 to vector<8x128xi32>
    %364 = arith.cmpi eq, %361, %363 : vector<8x128xi32>
    %365 = vector.shape_cast %63 : vector<8x1xf32> to vector<8x1xf32>
    %366 = vector.broadcast %365 : vector<8x1xf32> to vector<8x128xf32>
    %367 = arith.select %364, %366, %362 : vector<8x128xi1>, vector<8x128xf32>
    %c1_i32 = arith.constant 1 : i32
    %368 = vector.broadcast %c1_i32 : i32 to vector<8x128xi32>
    %369 = arith.cmpi eq, %361, %368 : vector<8x128xi32>
    %370 = vector.shape_cast %68 : vector<8x1xf32> to vector<8x1xf32>
    %371 = vector.broadcast %370 : vector<8x1xf32> to vector<8x128xf32>
    %372 = arith.select %369, %371, %367 : vector<8x128xi1>, vector<8x128xf32>
    %c2_i32 = arith.constant 2 : i32
    %373 = vector.broadcast %c2_i32 : i32 to vector<8x128xi32>
    %374 = arith.cmpi eq, %361, %373 : vector<8x128xi32>
    %375 = vector.shape_cast %84 : vector<8x1xf32> to vector<8x1xf32>
    %376 = vector.broadcast %375 : vector<8x1xf32> to vector<8x128xf32>
    %377 = arith.select %374, %376, %372 : vector<8x128xi1>, vector<8x128xf32>
    %c3_i32 = arith.constant 3 : i32
    %378 = vector.broadcast %c3_i32 : i32 to vector<8x128xi32>
    %379 = arith.cmpi eq, %361, %378 : vector<8x128xi32>
    %380 = vector.shape_cast %94 : vector<8x1xf32> to vector<8x1xf32>
    %381 = vector.broadcast %380 : vector<8x1xf32> to vector<8x128xf32>
    %382 = arith.select %379, %381, %377 : vector<8x128xi1>, vector<8x128xf32>
    %c4_i32 = arith.constant 4 : i32
    %383 = vector.broadcast %c4_i32 : i32 to vector<8x128xi32>
    %384 = arith.cmpi eq, %361, %383 : vector<8x128xi32>
    %385 = vector.shape_cast %103 : vector<8x1xf32> to vector<8x1xf32>
    %386 = vector.broadcast %385 : vector<8x1xf32> to vector<8x128xf32>
    %387 = arith.select %384, %386, %382 : vector<8x128xi1>, vector<8x128xf32>
    %c5_i32 = arith.constant 5 : i32
    %388 = vector.broadcast %c5_i32 : i32 to vector<8x128xi32>
    %389 = arith.cmpi eq, %361, %388 : vector<8x128xi32>
    %390 = vector.shape_cast %108 : vector<8x1xf32> to vector<8x1xf32>
    %391 = vector.broadcast %390 : vector<8x1xf32> to vector<8x128xf32>
    %392 = arith.select %389, %391, %387 : vector<8x128xi1>, vector<8x128xf32>
    %c6_i32 = arith.constant 6 : i32
    %393 = vector.broadcast %c6_i32 : i32 to vector<8x128xi32>
    %394 = arith.cmpi eq, %361, %393 : vector<8x128xi32>
    %395 = vector.shape_cast %124 : vector<8x1xf32> to vector<8x1xf32>
    %396 = vector.broadcast %395 : vector<8x1xf32> to vector<8x128xf32>
    %397 = arith.select %394, %396, %392 : vector<8x128xi1>, vector<8x128xf32>
    %c7_i32 = arith.constant 7 : i32
    %398 = vector.broadcast %c7_i32 : i32 to vector<8x128xi32>
    %399 = arith.cmpi eq, %361, %398 : vector<8x128xi32>
    %400 = vector.shape_cast %134 : vector<8x1xf32> to vector<8x1xf32>
    %401 = vector.broadcast %400 : vector<8x1xf32> to vector<8x128xf32>
    %402 = arith.select %399, %401, %397 : vector<8x128xi1>, vector<8x128xf32>
    %c8_i32 = arith.constant 8 : i32
    %403 = vector.broadcast %c8_i32 : i32 to vector<8x128xi32>
    %404 = arith.cmpi eq, %361, %403 : vector<8x128xi32>
    %405 = vector.shape_cast %144 : vector<8x1xf32> to vector<8x1xf32>
    %406 = vector.broadcast %405 : vector<8x1xf32> to vector<8x128xf32>
    %407 = arith.select %404, %406, %402 : vector<8x128xi1>, vector<8x128xf32>
    %c9_i32 = arith.constant 9 : i32
    %408 = vector.broadcast %c9_i32 : i32 to vector<8x128xi32>
    %409 = arith.cmpi eq, %361, %408 : vector<8x128xi32>
    %410 = vector.shape_cast %161 : vector<8x1xf32> to vector<8x1xf32>
    %411 = vector.broadcast %410 : vector<8x1xf32> to vector<8x128xf32>
    %412 = arith.select %409, %411, %407 : vector<8x128xi1>, vector<8x128xf32>
    %c10_i32 = arith.constant 10 : i32
    %413 = vector.broadcast %c10_i32 : i32 to vector<8x128xi32>
    %414 = arith.cmpi eq, %361, %413 : vector<8x128xi32>
    %415 = vector.shape_cast %174 : vector<8x1xf32> to vector<8x1xf32>
    %416 = vector.broadcast %415 : vector<8x1xf32> to vector<8x128xf32>
    %417 = arith.select %414, %416, %412 : vector<8x128xi1>, vector<8x128xf32>
    %c11_i32 = arith.constant 11 : i32
    %418 = vector.broadcast %c11_i32 : i32 to vector<8x128xi32>
    %419 = arith.cmpi eq, %361, %418 : vector<8x128xi32>
    %420 = vector.shape_cast %208 : vector<8x1xf32> to vector<8x1xf32>
    %421 = vector.broadcast %420 : vector<8x1xf32> to vector<8x128xf32>
    %422 = arith.select %419, %421, %417 : vector<8x128xi1>, vector<8x128xf32>
    %c12_i32 = arith.constant 12 : i32
    %423 = vector.broadcast %c12_i32 : i32 to vector<8x128xi32>
    %424 = arith.cmpi eq, %361, %423 : vector<8x128xi32>
    %425 = vector.shape_cast %234 : vector<8x1xf32> to vector<8x1xf32>
    %426 = vector.broadcast %425 : vector<8x1xf32> to vector<8x128xf32>
    %427 = arith.select %424, %426, %422 : vector<8x128xi1>, vector<8x128xf32>
    %c13_i32 = arith.constant 13 : i32
    %428 = vector.broadcast %c13_i32 : i32 to vector<8x128xi32>
    %429 = arith.cmpi eq, %361, %428 : vector<8x128xi32>
    %430 = vector.shape_cast %261 : vector<8x1xf32> to vector<8x1xf32>
    %431 = vector.broadcast %430 : vector<8x1xf32> to vector<8x128xf32>
    %432 = arith.select %429, %431, %427 : vector<8x128xi1>, vector<8x128xf32>
    %c14_i32 = arith.constant 14 : i32
    %433 = vector.broadcast %c14_i32 : i32 to vector<8x128xi32>
    %434 = arith.cmpi eq, %361, %433 : vector<8x128xi32>
    %435 = vector.shape_cast %321 : vector<8x1xf32> to vector<8x1xf32>
    %436 = vector.broadcast %435 : vector<8x1xf32> to vector<8x128xf32>
    %437 = arith.select %434, %436, %432 : vector<8x128xi1>, vector<8x128xf32>
    %c15_i32 = arith.constant 15 : i32
    %438 = vector.broadcast %c15_i32 : i32 to vector<8x128xi32>
    %439 = arith.cmpi eq, %361, %438 : vector<8x128xi32>
    %440 = vector.shape_cast %334 : vector<8x1xf32> to vector<8x1xf32>
    %441 = vector.broadcast %440 : vector<8x1xf32> to vector<8x128xf32>
    %442 = arith.select %439, %441, %437 : vector<8x128xi1>, vector<8x128xf32>
    %c16_i32 = arith.constant 16 : i32
    %443 = vector.broadcast %c16_i32 : i32 to vector<8x128xi32>
    %444 = arith.cmpi eq, %361, %443 : vector<8x128xi32>
    %445 = vector.shape_cast %347 : vector<8x1xf32> to vector<8x1xf32>
    %446 = vector.broadcast %445 : vector<8x1xf32> to vector<8x128xf32>
    %447 = arith.select %444, %446, %442 : vector<8x128xi1>, vector<8x128xf32>
    %c17_i32 = arith.constant 17 : i32
    %448 = vector.broadcast %c17_i32 : i32 to vector<8x128xi32>
    %449 = arith.cmpi eq, %361, %448 : vector<8x128xi32>
    %450 = vector.shape_cast %360 : vector<8x1xf32> to vector<8x1xf32>
    %451 = vector.broadcast %450 : vector<8x1xf32> to vector<8x128xf32>
    %452 = arith.select %449, %451, %447 : vector<8x128xi1>, vector<8x128xf32>
    %c0_126 = arith.constant 0 : index
    %c0_127 = arith.constant 0 : index
    %453 = vector.load %arg24[%c0_126, %c0_127] : memref<8x128xf32, #tpu.memory_space<vmem>>, vector<8x128xf32>
    tpu.vector_store %arg24[%c0_126, %c0_127], %452 {strides = array<i32>} : memref<8x128xf32, #tpu.memory_space<vmem>>, vector<8x128xf32>,
    return
  }
  func.func @transform_0(%arg0: i32) -> (i32, i32) {
    %c0_i32 = arith.constant 0 : i32
    %c0_i32_0 = arith.constant 0 : i32
    return %arg0, %c0_i32 : i32, i32
  }
  func.func @transform_1(%arg0: i32) -> (i32, i32) {
    %c0_i32 = arith.constant 0 : i32
    %c0_i32_0 = arith.constant 0 : i32
    return %arg0, %c0_i32 : i32, i32
  }
  func.func @transform_2(%arg0: i32) -> (i32, i32) {
    %c0_i32 = arith.constant 0 : i32
    %c0_i32_0 = arith.constant 0 : i32
    %c0_i32_1 = arith.constant 0 : i32
    return %c0_i32, %c0_i32_0 : i32, i32
  }
  func.func @transform_3(%arg0: i32) -> (i32, i32) {
    %c0_i32 = arith.constant 0 : i32
    %c0_i32_0 = arith.constant 0 : i32
    %c0_i32_1 = arith.constant 0 : i32
    return %c0_i32, %c0_i32_0 : i32, i32
  }
  func.func @transform_4(%arg0: i32) -> (i32, i32) {
    %c0_i32 = arith.constant 0 : i32
    %c0_i32_0 = arith.constant 0 : i32
    %c0_i32_1 = arith.constant 0 : i32
    return %c0_i32, %c0_i32_0 : i32, i32
  }
  func.func @transform_5(%arg0: i32) -> (i32, i32) {
    %c0_i32 = arith.constant 0 : i32
    %c0_i32_0 = arith.constant 0 : i32
    %c0_i32_1 = arith.constant 0 : i32
    return %c0_i32, %c0_i32_0 : i32, i32
  }
  func.func @transform_6(%arg0: i32) -> (i32, i32) {
    %c0_i32 = arith.constant 0 : i32
    %c0_i32_0 = arith.constant 0 : i32
    %c0_i32_1 = arith.constant 0 : i32
    return %c0_i32, %c0_i32_0 : i32, i32
  }
  func.func @transform_7(%arg0: i32) -> (i32, i32) {
    %c0_i32 = arith.constant 0 : i32
    %c0_i32_0 = arith.constant 0 : i32
    %c0_i32_1 = arith.constant 0 : i32
    return %c0_i32, %c0_i32_0 : i32, i32
  }
  func.func @transform_8(%arg0: i32) -> (i32, i32) {
    %c0_i32 = arith.constant 0 : i32
    %c0_i32_0 = arith.constant 0 : i32
    %c0_i32_1 = arith.constant 0 : i32
    return %c0_i32, %c0_i32_0 : i32, i32
  }
  func.func @transform_9(%arg0: i32) -> (i32, i32) {
    %c0_i32 = arith.constant 0 : i32
    %c0_i32_0 = arith.constant 0 : i32
    %c0_i32_1 = arith.constant 0 : i32
    return %c0_i32, %c0_i32_0 : i32, i32
  }
  func.func @transform_10(%arg0: i32) -> (i32, i32) {
    %c0_i32 = arith.constant 0 : i32
    %c0_i32_0 = arith.constant 0 : i32
    %c0_i32_1 = arith.constant 0 : i32
    return %c0_i32, %c0_i32_0 : i32, i32
  }
  func.func @transform_11(%arg0: i32) -> (i32, i32) {
    %c0_i32 = arith.constant 0 : i32
    %c0_i32_0 = arith.constant 0 : i32
    %c0_i32_1 = arith.constant 0 : i32
    return %c0_i32, %c0_i32_0 : i32, i32
  }
  func.func @transform_12(%arg0: i32) -> (i32, i32) {
    %c0_i32 = arith.constant 0 : i32
    %c0_i32_0 = arith.constant 0 : i32
    %c0_i32_1 = arith.constant 0 : i32
    return %c0_i32, %c0_i32_0 : i32, i32
  }
  func.func @transform_13(%arg0: i32) -> (i32, i32) {
    %c0_i32 = arith.constant 0 : i32
    %c0_i32_0 = arith.constant 0 : i32
    %c0_i32_1 = arith.constant 0 : i32
    return %c0_i32, %c0_i32_0 : i32, i32
  }
  func.func @transform_14(%arg0: i32) -> (i32, i32) {
    %c0_i32 = arith.constant 0 : i32
    %c0_i32_0 = arith.constant 0 : i32
    %c0_i32_1 = arith.constant 0 : i32
    return %c0_i32, %c0_i32_0 : i32, i32
  }
  func.func @transform_15(%arg0: i32) -> (i32, i32) {
    %c0_i32 = arith.constant 0 : i32
    %c0_i32_0 = arith.constant 0 : i32
    %c0_i32_1 = arith.constant 0 : i32
    return %c0_i32, %c0_i32_0 : i32, i32
  }
  func.func @transform_16(%arg0: i32) -> (i32, i32) {
    %c0_i32 = arith.constant 0 : i32
    %c0_i32_0 = arith.constant 0 : i32
    %c0_i32_1 = arith.constant 0 : i32
    return %c0_i32, %c0_i32_0 : i32, i32
  }
  func.func @transform_17(%arg0: i32) -> (i32, i32) {
    %c0_i32 = arith.constant 0 : i32
    %c0_i32_0 = arith.constant 0 : i32
    %c0_i32_1 = arith.constant 0 : i32
    return %c0_i32, %c0_i32_0 : i32, i32
  }
  func.func @transform_18(%arg0: i32) -> (i32, i32) {
    %c0_i32 = arith.constant 0 : i32
    %c0_i32_0 = arith.constant 0 : i32
    %c0_i32_1 = arith.constant 0 : i32
    return %c0_i32, %c0_i32_0 : i32, i32
  }
  func.func @transform_19(%arg0: i32) -> (i32, i32) {
    %c0_i32 = arith.constant 0 : i32
    %c0_i32_0 = arith.constant 0 : i32
    %c0_i32_1 = arith.constant 0 : i32
    return %c0_i32, %c0_i32_0 : i32, i32
  }
  func.func @transform_20(%arg0: i32) -> (i32, i32) {
    %c0_i32 = arith.constant 0 : i32
    %c0_i32_0 = arith.constant 0 : i32
    %c0_i32_1 = arith.constant 0 : i32
    return %c0_i32, %c0_i32_0 : i32, i32
  }
  func.func @transform_21(%arg0: i32) -> (i32, i32) {
    %c0_i32 = arith.constant 0 : i32
    %c0_i32_0 = arith.constant 0 : i32
    %c0_i32_1 = arith.constant 0 : i32
    return %c0_i32, %c0_i32_0 : i32, i32
  }
  func.func @transform_22(%arg0: i32) -> (i32, i32) {
    %c0_i32 = arith.constant 0 : i32
    %c0_i32_0 = arith.constant 0 : i32
    %c0_i32_1 = arith.constant 0 : i32
    return %c0_i32, %c0_i32_0 : i32, i32
  }
  func.func @transform_23(%arg0: i32) -> (i32, i32) {
    %c0_i32 = arith.constant 0 : i32
    %c0_i32_0 = arith.constant 0 : i32
    return %arg0, %c0_i32 : i32, i32
  }
}

</mosaic_0001>

<llo_original>
// kernel: tpu_custom_call.1
$region0: #{tpu_custom_call.1}
  #allocation0 [shape = 'u32[]', space=smem, size = 0x4, offset = 0x4, fixed_abs, tag = 'smem constant byte address 0x4 - core index']
  #allocation1 [shape = 'u32[72,128]{1,0:T(1,128)}', space=vmem, size = 0x9000, scoped, tag = 'internal scratch']
  #allocation2 [shape = 'f32[1,1]{1,0:T(1,128)S(1)}', space=vmem, size = 0x200, scoped, tag = 'scoped memory for tpu_custom_call.1']
  #allocation3 [shape = 'f32[1,1]{1,0:T(1,128)S(1)}', space=vmem, size = 0x200, scoped, tag = 'scoped memory for tpu_custom_call.1']
  #allocation4 [shape = 'f32[1,1]{1,0:T(1,128)S(1)}', space=vmem, size = 0x200, scoped, tag = 'scoped memory for tpu_custom_call.1']
  %s0 = inlined_call_operand.vmem [shape: f32[24,128], index: 0, kind: input, shape index: {}]
  %s1 = inlined_call_operand.vmem [shape: f32[24,128], index: 1, kind: input, shape index: {}]
  %s2 = inlined_call_operand.vmem [shape: bf16[128,192], index: 2, kind: input, shape index: {}]
  %s3 = inlined_call_operand.vmem [shape: f32[1,64], index: 3, kind: input, shape index: {}]
  %s4 = inlined_call_operand.vmem [shape: bf16[64,32], index: 4, kind: input, shape index: {}]
  %s5 = inlined_call_operand.vmem [shape: f32[1,32], index: 5, kind: input, shape index: {}]
  %s6 = inlined_call_operand.vmem [shape: f32[1,32], index: 6, kind: input, shape index: {}]
  %s7 = inlined_call_operand.<no memory space> [shape: f32[1,1], index: 7, kind: input, shape index: {}]
  %s8 = inlined_call_operand.vmem [shape: bf16[128,192], index: 8, kind: input, shape index: {}]
  %s9 = inlined_call_operand.vmem [shape: f32[1,64], index: 9, kind: input, shape index: {}]
  %s10 = inlined_call_operand.vmem [shape: bf16[64,32], index: 10, kind: input, shape index: {}]
  %s11 = inlined_call_operand.vmem [shape: f32[1,32], index: 11, kind: input, shape index: {}]
  %s12 = inlined_call_operand.vmem [shape: f32[1,32], index: 12, kind: input, shape index: {}]
  %s13 = inlined_call_operand.<no memory space> [shape: f32[1,1], index: 13, kind: input, shape index: {}]
  %s14 = inlined_call_operand.vmem [shape: f32[1,128], index: 14, kind: input, shape index: {}]
  %s15 = inlined_call_operand.vmem [shape: bf16[128,64], index: 15, kind: input, shape index: {}]
  %s16 = inlined_call_operand.vmem [shape: f32[1,64], index: 16, kind: input, shape index: {}]
  %s17 = inlined_call_operand.vmem [shape: f32[1,64], index: 17, kind: input, shape index: {}]
  %s18 = inlined_call_operand.<no memory space> [shape: f32[1,1], index: 18, kind: input, shape index: {}]
  %s19 = inlined_call_operand.vmem [shape: f32[8,16], index: 19, kind: input, shape index: {}]
  %s20 = inlined_call_operand.vmem [shape: f32[1,16], index: 20, kind: input, shape index: {}]
  %s21 = inlined_call_operand.vmem [shape: f32[4,16], index: 21, kind: input, shape index: {}]
  %s22 = inlined_call_operand.vmem [shape: f32[4,1], index: 22, kind: input, shape index: {}]
  %s23 = inlined_call_operand.hbm [shape: f32[24,128], index: 23, kind: output, shape index: {}]
  %s24 = sld [smem:[#allocation0]]
  $region125: #{tpu_custom_call.1} parent=0
    _
  %s26 = ssub.s32 1, %s24
  %s27 = scalar_select 0, %s26, %s24
  %v28 = vstv %s7
  %29 = vst [vmem:[#allocation2] sm:$0x1] %v28
  %v30 = vstv %s13
  %31 = vst [vmem:[#allocation3] sm:$0x1] %v30
  %v32 = vstv %s18
  %33 = vst [vmem:[#allocation4] sm:$0x1] %v32
  $region1: #{tpu_custom_call.1} parent=0
    #allocation5 [shape = 'u8[8192]{0}', space=vmem, size = 0x2000, scoped, tag = 'output window, operand 0']
    #allocation6 [shape = 's32[2]{0}', space=sflag, size = 0x8, scoped, tag = 'scoped memory for tpu_custom_call.1']
    %34 = vsyncpa [#allocation6], 0
    %s35 = scalar_lea.sflag [#allocation6], 1
    %36 = vsyncpa %s35, 0
    loop: start=0, step=1, limit=5
    $region2: #{tpu_custom_call.1} parent=1 // loop_pre_header
      _
    $region3: #{tpu_custom_call.1} parent=1 // loop_header
      %s38 = sphi 0, %s42
      %p39 = scmp.ge.s32.totalorder %s38, 5
      %s48 = sphi 0, %s50
      %s51 = sphi 0, %s48
      %s52 = sphi 0, %s51
      %s68 = sphi 0, %s52
      %s74 = sphi 0, %s76
      %s77 = sphi 0, %s74
      %s78 = sphi 0, %s77
      %s94 = sphi 0, %s78
      %s98 = sphi 0, %s98
      %s100 = sphi 0, %s98
      %s101 = sphi 0, %s100
      %s115 = sphi 0, %s101
      %s119 = sphi 0, %s119
      %s121 = sphi 0, %s119
      %s122 = sphi 0, %s121
      %s136 = sphi 0, %s122
      %s140 = sphi 0, %s140
      %s142 = sphi 0, %s140
      %s143 = sphi 0, %s142
      %s157 = sphi 0, %s143
      %s161 = sphi 0, %s161
      %s163 = sphi 0, %s161
      %s164 = sphi 0, %s163
      %s178 = sphi 0, %s164
      %s182 = sphi 0, %s182
      %s184 = sphi 0, %s182
      %s185 = sphi 0, %s184
      %s199 = sphi 0, %s185
      %s203 = sphi 0, %s203
      %s205 = sphi 0, %s203
      %s206 = sphi 0, %s205
      %s220 = sphi 0, %s206
      %s224 = sphi 0, %s224
      %s226 = sphi 0, %s224
      %s227 = sphi 0, %s226
      %s241 = sphi 0, %s227
      %s245 = sphi 0, %s245
      %s247 = sphi 0, %s245
      %s248 = sphi 0, %s247
      %s262 = sphi 0, %s248
      %s266 = sphi 0, %s266
      %s268 = sphi 0, %s266
      %s269 = sphi 0, %s268
      %s283 = sphi 0, %s269
      %s287 = sphi 0, %s287
      %s289 = sphi 0, %s287
      %s290 = sphi 0, %s289
      %s304 = sphi 0, %s290
      %s308 = sphi 0, %s308
      %s310 = sphi 0, %s308
      %s311 = sphi 0, %s310
      %s325 = sphi 0, %s311
      %s329 = sphi 0, %s329
      %s331 = sphi 0, %s329
      %s332 = sphi 0, %s331
      %s346 = sphi 0, %s332
      %s350 = sphi 0, %s350
      %s352 = sphi 0, %s350
      %s353 = sphi 0, %s352
      %s367 = sphi 0, %s353
      %s371 = sphi 0, %s371
      %s373 = sphi 0, %s371
      %s374 = sphi 0, %s373
      %s388 = sphi 0, %s374
      %s392 = sphi 0, %s392
      %s394 = sphi 0, %s392
      %s395 = sphi 0, %s394
      %s409 = sphi 0, %s395
      %s413 = sphi 0, %s413
      %s415 = sphi 0, %s413
      %s416 = sphi 0, %s415
      %s430 = sphi 0, %s416
      %s434 = sphi 0, %s434
      %s436 = sphi 0, %s434
      %s437 = sphi 0, %s436
      %s451 = sphi 0, %s437
      %s455 = sphi 0, %s455
      %s457 = sphi 0, %s455
      %s458 = sphi 0, %s457
      %s472 = sphi 0, %s458
      %s476 = sphi 0, %s476
      %s478 = sphi 0, %s476
      %s479 = sphi 0, %s478
      %s493 = sphi 0, %s479
      %s497 = sphi 0, %s497
      %s499 = sphi 0, %s497
      %s500 = sphi 0, %s499
      %s514 = sphi 0, %s500
      %s518 = sphi 0, %s518
      %s520 = sphi 0, %s518
      %s521 = sphi 0, %s520
      %s535 = sphi 0, %s521
      %s541 = sphi 0, %s543
      %s544 = sphi 0, %s541
      %s545 = sphi 0, %s544
      %s561 = sphi 0, %s545
    $region4: #{tpu_custom_call.1} parent=1 // loop_header_branch
      %41 = sbr.rel (%p39) target = $region8
    $region5: #{tpu_custom_call.1} parent=1 // loop_body
      %s43 = ssub.s32 %s38, 1
      %s44 = ssub.s32 %s38, 2
      %s45 = sadd.s32 %s38, 1
      %s46 = ssub.s32 %s38, %s45
      %p47 = scmp.eq.s32.totalorder %s46, 0
      %s49 = sadd.s32 %s48, 1
      %s50 = scalar_select %p47, %s48, %s49
      %p53 = pneg %p47
      %p54 = scmp.eq.s32.totalorder %s38, 2
      %p55 = por %p53, %p54
      %p56 = scmp.ne.s32.totalorder %s48, %s51
      %p57 = scmp.eq.s32.totalorder %s38, 0
      %p58 = por %p56, %p57
      %p59 = scmp.ne.s32.totalorder %s48, %s51
      %p60 = scmp.eq.s32.totalorder %s43, 2
      %p61 = por %p59, %p60
      %p62 = scmp.ne.s32.totalorder %s51, %s52
      %p63 = scmp.eq.s32.totalorder %s43, 0
      %p64 = por %p62, %p63
      %p65 = scmp.ne.s32.totalorder %s51, %s52
      %p66 = scmp.eq.s32.totalorder %s44, 2
      %p67 = por %p65, %p66
      %p69 = scmp.ne.s32.totalorder %s52, %s68
      %p70 = scmp.eq.s32.totalorder %s44, 0
      %p71 = por %p69, %p70
      %s72 = ssub.s32 %s38, %s45
      %p73 = scmp.eq.s32.totalorder %s72, 0
      %s75 = sadd.s32 %s74, 1
      %s76 = scalar_select %p73, %s74, %s75
      %p79 = pneg %p73
      %p80 = scmp.eq.s32.totalorder %s38, 2
      %p81 = por %p79, %p80
      %p82 = scmp.ne.s32.totalorder %s74, %s77
      %p83 = scmp.eq.s32.totalorder %s38, 0
      %p84 = por %p82, %p83
      %p85 = scmp.ne.s32.totalorder %s74, %s77
      %p86 = scmp.eq.s32.totalorder %s43, 2
      %p87 = por %p85, %p86
      %p88 = scmp.ne.s32.totalorder %s77, %s78
      %p89 = scmp.eq.s32.totalorder %s43, 0
      %p90 = por %p88, %p89
      %p91 = scmp.ne.s32.totalorder %s77, %s78
      %p92 = scmp.eq.s32.totalorder %s44, 2
      %p93 = por %p91, %p92
      %p95 = scmp.ne.s32.totalorder %s78, %s94
      %p96 = scmp.eq.s32.totalorder %s44, 0
      %p97 = por %p95, %p96
      %s99 = sadd.s32 %s98, 1
      %p102 = scmp.eq.s32.totalorder %s38, 2
      %p103 = scmp.ne.s32.totalorder %s98, %s100
      %p104 = scmp.eq.s32.totalorder %s38, 0
      %p105 = por %p103, %p104
      %p106 = scmp.ne.s32.totalorder %s98, %s100
      %p107 = scmp.eq.s32.totalorder %s43, 2
      %p108 = por %p106, %p107
      %p109 = scmp.ne.s32.totalorder %s100, %s101
      %p110 = scmp.eq.s32.totalorder %s43, 0
      %p111 = por %p109, %p110
      %p112 = scmp.ne.s32.totalorder %s100, %s101
      %p113 = scmp.eq.s32.totalorder %s44, 2
      %p114 = por %p112, %p113
      %p116 = scmp.ne.s32.totalorder %s101, %s115
      %p117 = scmp.eq.s32.totalorder %s44, 0
      %p118 = por %p116, %p117
      %s120 = sadd.s32 %s119, 1
      %p123 = scmp.eq.s32.totalorder %s38, 2
      %p124 = scmp.ne.s32.totalorder %s119, %s121
      %p125 = scmp.eq.s32.totalorder %s38, 0
      %p126 = por %p124, %p125
      %p127 = scmp.ne.s32.totalorder %s119, %s121
      %p128 = scmp.eq.s32.totalorder %s43, 2
      %p129 = por %p127, %p128
      %p130 = scmp.ne.s32.totalorder %s121, %s122
      %p131 = scmp.eq.s32.totalorder %s43, 0
      %p132 = por %p130, %p131
      %p133 = scmp.ne.s32.totalorder %s121, %s122
      %p134 = scmp.eq.s32.totalorder %s44, 2
      %p135 = por %p133, %p134
      %p137 = scmp.ne.s32.totalorder %s122, %s136
      %p138 = scmp.eq.s32.totalorder %s44, 0
      %p139 = por %p137, %p138
      %s141 = sadd.s32 %s140, 1
      %p144 = scmp.eq.s32.totalorder %s38, 2
      %p145 = scmp.ne.s32.totalorder %s140, %s142
      %p146 = scmp.eq.s32.totalorder %s38, 0
      %p147 = por %p145, %p146
      %p148 = scmp.ne.s32.totalorder %s140, %s142
      %p149 = scmp.eq.s32.totalorder %s43, 2
      %p150 = por %p148, %p149
      %p151 = scmp.ne.s32.totalorder %s142, %s143
      %p152 = scmp.eq.s32.totalorder %s43, 0
      %p153 = por %p151, %p152
      %p154 = scmp.ne.s32.totalorder %s142, %s143
      %p155 = scmp.eq.s32.totalorder %s44, 2
      %p156 = por %p154, %p155
      %p158 = scmp.ne.s32.totalorder %s143, %s157
      %p159 = scmp.eq.s32.totalorder %s44, 0
      %p160 = por %p158, %p159
      %s162 = sadd.s32 %s161, 1
      %p165 = scmp.eq.s32.totalorder %s38, 2
      %p166 = scmp.ne.s32.totalorder %s161, %s163
      %p167 = scmp.eq.s32.totalorder %s38, 0
      %p168 = por %p166, %p167
      %p169 = scmp.ne.s32.totalorder %s161, %s163
      %p170 = scmp.eq.s32.totalorder %s43, 2
      %p171 = por %p169, %p170
      %p172 = scmp.ne.s32.totalorder %s163, %s164
      %p173 = scmp.eq.s32.totalorder %s43, 0
      %p174 = por %p172, %p173
      %p175 = scmp.ne.s32.totalorder %s163, %s164
      %p176 = scmp.eq.s32.totalorder %s44, 2
      %p177 = por %p175, %p176
      %p179 = scmp.ne.s32.totalorder %s164, %s178
      %p180 = scmp.eq.s32.totalorder %s44, 0
      %p181 = por %p179, %p180
      %s183 = sadd.s32 %s182, 1
      %p186 = scmp.eq.s32.totalorder %s38, 2
      %p187 = scmp.ne.s32.totalorder %s182, %s184
      %p188 = scmp.eq.s32.totalorder %s38, 0
      %p189 = por %p187, %p188
      %p190 = scmp.ne.s32.totalorder %s182, %s184
      %p191 = scmp.eq.s32.totalorder %s43, 2
      %p192 = por %p190, %p191
      %p193 = scmp.ne.s32.totalorder %s184, %s185
      %p194 = scmp.eq.s32.totalorder %s43, 0
      %p195 = por %p193, %p194
      %p196 = scmp.ne.s32.totalorder %s184, %s185
      %p197 = scmp.eq.s32.totalorder %s44, 2
      %p198 = por %p196, %p197
      %p200 = scmp.ne.s32.totalorder %s185, %s199
      %p201 = scmp.eq.s32.totalorder %s44, 0
      %p202 = por %p200, %p201
      %s204 = sadd.s32 %s203, 1
      %p207 = scmp.eq.s32.totalorder %s38, 2
      %p208 = scmp.ne.s32.totalorder %s203, %s205
      %p209 = scmp.eq.s32.totalorder %s38, 0
      %p210 = por %p208, %p209
      %p211 = scmp.ne.s32.totalorder %s203, %s205
      %p212 = scmp.eq.s32.totalorder %s43, 2
      %p213 = por %p211, %p212
      %p214 = scmp.ne.s32.totalorder %s205, %s206
      %p215 = scmp.eq.s32.totalorder %s43, 0
      %p216 = por %p214, %p215
      %p217 = scmp.ne.s32.totalorder %s205, %s206
      %p218 = scmp.eq.s32.totalorder %s44, 2
      %p219 = por %p217, %p218
      %p221 = scmp.ne.s32.totalorder %s206, %s220
      %p222 = scmp.eq.s32.totalorder %s44, 0
      %p223 = por %p221, %p222
      %s225 = sadd.s32 %s224, 1
      %p228 = scmp.eq.s32.totalorder %s38, 2
      %p229 = scmp.ne.s32.totalorder %s224, %s226
      %p230 = scmp.eq.s32.totalorder %s38, 0
      %p231 = por %p229, %p230
      %p232 = scmp.ne.s32.totalorder %s224, %s226
      %p233 = scmp.eq.s32.totalorder %s43, 2
      %p234 = por %p232, %p233
      %p235 = scmp.ne.s32.totalorder %s226, %s227
      %p236 = scmp.eq.s32.totalorder %s43, 0
      %p237 = por %p235, %p236
      %p238 = scmp.ne.s32.totalorder %s226, %s227
      %p239 = scmp.eq.s32.totalorder %s44, 2
      %p240 = por %p238, %p239
      %p242 = scmp.ne.s32.totalorder %s227, %s241
      %p243 = scmp.eq.s32.totalorder %s44, 0
      %p244 = por %p242, %p243
      %s246 = sadd.s32 %s245, 1
      %p249 = scmp.eq.s32.totalorder %s38, 2
      %p250 = scmp.ne.s32.totalorder %s245, %s247
      %p251 = scmp.eq.s32.totalorder %s38, 0
      %p252 = por %p250, %p251
      %p253 = scmp.ne.s32.totalorder %s245, %s247
      %p254 = scmp.eq.s32.totalorder %s43, 2
      %p255 = por %p253, %p254
      %p256 = scmp.ne.s32.totalorder %s247, %s248
      %p257 = scmp.eq.s32.totalorder %s43, 0
      %p258 = por %p256, %p257
      %p259 = scmp.ne.s32.totalorder %s247, %s248
      %p260 = scmp.eq.s32.totalorder %s44, 2
      %p261 = por %p259, %p260
      %p263 = scmp.ne.s32.totalorder %s248, %s262
      %p264 = scmp.eq.s32.totalorder %s44, 0
      %p265 = por %p263, %p264
      %s267 = sadd.s32 %s266, 1
      %p270 = scmp.eq.s32.totalorder %s38, 2
      %p271 = scmp.ne.s32.totalorder %s266, %s268
      %p272 = scmp.eq.s32.totalorder %s38, 0
      %p273 = por %p271, %p272
      %p274 = scmp.ne.s32.totalorder %s266, %s268
      %p275 = scmp.eq.s32.totalorder %s43, 2
      %p276 = por %p274, %p275
      %p277 = scmp.ne.s32.totalorder %s268, %s269
      %p278 = scmp.eq.s32.totalorder %s43, 0
      %p279 = por %p277, %p278
      %p280 = scmp.ne.s32.totalorder %s268, %s269
      %p281 = scmp.eq.s32.totalorder %s44, 2
      %p282 = por %p280, %p281
      %p284 = scmp.ne.s32.totalorder %s269, %s283
      %p285 = scmp.eq.s32.totalorder %s44, 0
      %p286 = por %p284, %p285
      %s288 = sadd.s32 %s287, 1
      %p291 = scmp.eq.s32.totalorder %s38, 2
      %p292 = scmp.ne.s32.totalorder %s287, %s289
      %p293 = scmp.eq.s32.totalorder %s38, 0
      %p294 = por %p292, %p293
      %p295 = scmp.ne.s32.totalorder %s287, %s289
      %p296 = scmp.eq.s32.totalorder %s43, 2
      %p297 = por %p295, %p296
      %p298 = scmp.ne.s32.totalorder %s289, %s290
      %p299 = scmp.eq.s32.totalorder %s43, 0
      %p300 = por %p298, %p299
      %p301 = scmp.ne.s32.totalorder %s289, %s290
      %p302 = scmp.eq.s32.totalorder %s44, 2
      %p303 = por %p301, %p302
      %p305 = scmp.ne.s32.totalorder %s290, %s304
      %p306 = scmp.eq.s32.totalorder %s44, 0
      %p307 = por %p305, %p306
      %s309 = sadd.s32 %s308, 1
      %p312 = scmp.eq.s32.totalorder %s38, 2
      %p313 = scmp.ne.s32.totalorder %s308, %s310
      %p314 = scmp.eq.s32.totalorder %s38, 0
      %p315 = por %p313, %p314
      %p316 = scmp.ne.s32.totalorder %s308, %s310
      %p317 = scmp.eq.s32.totalorder %s43, 2
      %p318 = por %p316, %p317
      %p319 = scmp.ne.s32.totalorder %s310, %s311
      %p320 = scmp.eq.s32.totalorder %s43, 0
      %p321 = por %p319, %p320
      %p322 = scmp.ne.s32.totalorder %s310, %s311
      %p323 = scmp.eq.s32.totalorder %s44, 2
      %p324 = por %p322, %p323
      %p326 = scmp.ne.s32.totalorder %s311, %s325
      %p327 = scmp.eq.s32.totalorder %s44, 0
      %p328 = por %p326, %p327
      %s330 = sadd.s32 %s329, 1
      %p333 = scmp.eq.s32.totalorder %s38, 2
      %p334 = scmp.ne.s32.totalorder %s329, %s331
      %p335 = scmp.eq.s32.totalorder %s38, 0
      %p336 = por %p334, %p335
      %p337 = scmp.ne.s32.totalorder %s329, %s331
      %p338 = scmp.eq.s32.totalorder %s43, 2
      %p339 = por %p337, %p338
      %p340 = scmp.ne.s32.totalorder %s331, %s332
      %p341 = scmp.eq.s32.totalorder %s43, 0
      %p342 = por %p340, %p341
      %p343 = scmp.ne.s32.totalorder %s331, %s332
      %p344 = scmp.eq.s32.totalorder %s44, 2
      %p345 = por %p343, %p344
      %p347 = scmp.ne.s32.totalorder %s332, %s346
      %p348 = scmp.eq.s32.totalorder %s44, 0
      %p349 = por %p347, %p348
      %s351 = sadd.s32 %s350, 1
      %p354 = scmp.eq.s32.totalorder %s38, 2
      %p355 = scmp.ne.s32.totalorder %s350, %s352
      %p356 = scmp.eq.s32.totalorder %s38, 0
      %p357 = por %p355, %p356
      %p358 = scmp.ne.s32.totalorder %s350, %s352
      %p359 = scmp.eq.s32.totalorder %s43, 2
      %p360 = por %p358, %p359
      %p361 = scmp.ne.s32.totalorder %s352, %s353
      %p362 = scmp.eq.s32.totalorder %s43, 0
      %p363 = por %p361, %p362
      %p364 = scmp.ne.s32.totalorder %s352, %s353
      %p365 = scmp.eq.s32.totalorder %s44, 2
      %p366 = por %p364, %p365
      %p368 = scmp.ne.s32.totalorder %s353, %s367
      %p369 = scmp.eq.s32.totalorder %s44, 0
      %p370 = por %p368, %p369
      %s372 = sadd.s32 %s371, 1
      %p375 = scmp.eq.s32.totalorder %s38, 2
      %p376 = scmp.ne.s32.totalorder %s371, %s373
      %p377 = scmp.eq.s32.totalorder %s38, 0
      %p378 = por %p376, %p377
      %p379 = scmp.ne.s32.totalorder %s371, %s373
      %p380 = scmp.eq.s32.totalorder %s43, 2
      %p381 = por %p379, %p380
      %p382 = scmp.ne.s32.totalorder %s373, %s374
      %p383 = scmp.eq.s32.totalorder %s43, 0
      %p384 = por %p382, %p383
      %p385 = scmp.ne.s32.totalorder %s373, %s374
      %p386 = scmp.eq.s32.totalorder %s44, 2
      %p387 = por %p385, %p386
      %p389 = scmp.ne.s32.totalorder %s374, %s388
      %p390 = scmp.eq.s32.totalorder %s44, 0
      %p391 = por %p389, %p390
      %s393 = sadd.s32 %s392, 1
      %p396 = scmp.eq.s32.totalorder %s38, 2
      %p397 = scmp.ne.s32.totalorder %s392, %s394
      %p398 = scmp.eq.s32.totalorder %s38, 0
      %p399 = por %p397, %p398
      %p400 = scmp.ne.s32.totalorder %s392, %s394
      %p401 = scmp.eq.s32.totalorder %s43, 2
      %p402 = por %p400, %p401
      %p403 = scmp.ne.s32.totalorder %s394, %s395
      %p404 = scmp.eq.s32.totalorder %s43, 0
      %p405 = por %p403, %p404
      %p406 = scmp.ne.s32.totalorder %s394, %s395
      %p407 = scmp.eq.s32.totalorder %s44, 2
      %p408 = por %p406, %p407
      %p410 = scmp.ne.s32.totalorder %s395, %s409
      %p411 = scmp.eq.s32.totalorder %s44, 0
      %p412 = por %p410, %p411
      %s414 = sadd.s32 %s413, 1
      %p417 = scmp.eq.s32.totalorder %s38, 2
      %p418 = scmp.ne.s32.totalorder %s413, %s415
      %p419 = scmp.eq.s32.totalorder %s38, 0
      %p420 = por %p418, %p419
      %p421 = scmp.ne.s32.totalorder %s413, %s415
      %p422 = scmp.eq.s32.totalorder %s43, 2
      %p423 = por %p421, %p422
      %p424 = scmp.ne.s32.totalorder %s415, %s416
      %p425 = scmp.eq.s32.totalorder %s43, 0
      %p426 = por %p424, %p425
      %p427 = scmp.ne.s32.totalorder %s415, %s416
      %p428 = scmp.eq.s32.totalorder %s44, 2
      %p429 = por %p427, %p428
      %p431 = scmp.ne.s32.totalorder %s416, %s430
      %p432 = scmp.eq.s32.totalorder %s44, 0
      %p433 = por %p431, %p432
      %s435 = sadd.s32 %s434, 1
      %p438 = scmp.eq.s32.totalorder %s38, 2
      %p439 = scmp.ne.s32.totalorder %s434, %s436
      %p440 = scmp.eq.s32.totalorder %s38, 0
      %p441 = por %p439, %p440
      %p442 = scmp.ne.s32.totalorder %s434, %s436
      %p443 = scmp.eq.s32.totalorder %s43, 2
      %p444 = por %p442, %p443
      %p445 = scmp.ne.s32.totalorder %s436, %s437
      %p446 = scmp.eq.s32.totalorder %s43, 0
      %p447 = por %p445, %p446
      %p448 = scmp.ne.s32.totalorder %s436, %s437
      %p449 = scmp.eq.s32.totalorder %s44, 2
      %p450 = por %p448, %p449
      %p452 = scmp.ne.s32.totalorder %s437, %s451
      %p453 = scmp.eq.s32.totalorder %s44, 0
      %p454 = por %p452, %p453
      %s456 = sadd.s32 %s455, 1
      %p459 = scmp.eq.s32.totalorder %s38, 2
      %p460 = scmp.ne.s32.totalorder %s455, %s457
      %p461 = scmp.eq.s32.totalorder %s38, 0
      %p462 = por %p460, %p461
      %p463 = scmp.ne.s32.totalorder %s455, %s457
      %p464 = scmp.eq.s32.totalorder %s43, 2
      %p465 = por %p463, %p464
      %p466 = scmp.ne.s32.totalorder %s457, %s458
      %p467 = scmp.eq.s32.totalorder %s43, 0
      %p468 = por %p466, %p467
      %p469 = scmp.ne.s32.totalorder %s457, %s458
      %p470 = scmp.eq.s32.totalorder %s44, 2
      %p471 = por %p469, %p470
      %p473 = scmp.ne.s32.totalorder %s458, %s472
      %p474 = scmp.eq.s32.totalorder %s44, 0
      %p475 = por %p473, %p474
      %s477 = sadd.s32 %s476, 1
      %p480 = scmp.eq.s32.totalorder %s38, 2
      %p481 = scmp.ne.s32.totalorder %s476, %s478
      %p482 = scmp.eq.s32.totalorder %s38, 0
      %p483 = por %p481, %p482
      %p484 = scmp.ne.s32.totalorder %s476, %s478
      %p485 = scmp.eq.s32.totalorder %s43, 2
      %p486 = por %p484, %p485
      %p487 = scmp.ne.s32.totalorder %s478, %s479
      %p488 = scmp.eq.s32.totalorder %s43, 0
      %p489 = por %p487, %p488
      %p490 = scmp.ne.s32.totalorder %s478, %s479
      %p491 = scmp.eq.s32.totalorder %s44, 2
      %p492 = por %p490, %p491
      %p494 = scmp.ne.s32.totalorder %s479, %s493
      %p495 = scmp.eq.s32.totalorder %s44, 0
      %p496 = por %p494, %p495
      %s498 = sadd.s32 %s497, 1
      %p501 = scmp.eq.s32.totalorder %s38, 2
      %p502 = scmp.ne.s32.totalorder %s497, %s499
      %p503 = scmp.eq.s32.totalorder %s38, 0
      %p504 = por %p502, %p503
      %p505 = scmp.ne.s32.totalorder %s497, %s499
      %p506 = scmp.eq.s32.totalorder %s43, 2
      %p507 = por %p505, %p506
      %p508 = scmp.ne.s32.totalorder %s499, %s500
      %p509 = scmp.eq.s32.totalorder %s43, 0
      %p510 = por %p508, %p509
      %p511 = scmp.ne.s32.totalorder %s499, %s500
      %p512 = scmp.eq.s32.totalorder %s44, 2
      %p513 = por %p511, %p512
      %p515 = scmp.ne.s32.totalorder %s500, %s514
      %p516 = scmp.eq.s32.totalorder %s44, 0
      %p517 = por %p515, %p516
      %s519 = sadd.s32 %s518, 1
      %p522 = scmp.eq.s32.totalorder %s38, 2
      %p523 = scmp.ne.s32.totalorder %s518, %s520
      %p524 = scmp.eq.s32.totalorder %s38, 0
      %p525 = por %p523, %p524
      %p526 = scmp.ne.s32.totalorder %s518, %s520
      %p527 = scmp.eq.s32.totalorder %s43, 2
      %p528 = por %p526, %p527
      %p529 = scmp.ne.s32.totalorder %s520, %s521
      %p530 = scmp.eq.s32.totalorder %s43, 0
      %p531 = por %p529, %p530
      %p532 = scmp.ne.s32.totalorder %s520, %s521
      %p533 = scmp.eq.s32.totalorder %s44, 2
      %p534 = por %p532, %p533
      %p536 = scmp.ne.s32.totalorder %s521, %s535
      %p537 = scmp.eq.s32.totalorder %s44, 0
      %p538 = por %p536, %p537
      %s539 = ssub.s32 %s38, %s45
      %p540 = scmp.eq.s32.totalorder %s539, 0
      %s542 = sadd.s32 %s541, 1
      %s543 = scalar_select %p540, %s541, %s542
      %p546 = pneg %p540
      %p547 = scmp.eq.s32.totalorder %s38, 2
      %p548 = por %p546, %p547
      %p549 = scmp.ne.s32.totalorder %s541, %s544
      %p550 = scmp.eq.s32.totalorder %s38, 0
      %p551 = por %p549, %p550
      %p552 = scmp.ne.s32.totalorder %s541, %s544
      %p553 = scmp.eq.s32.totalorder %s43, 2
      %p554 = por %p552, %p553
      %p555 = scmp.ne.s32.totalorder %s544, %s545
      %p556 = scmp.eq.s32.totalorder %s43, 0
      %p557 = por %p555, %p556
      %p558 = scmp.ne.s32.totalorder %s544, %s545
      %p559 = scmp.eq.s32.totalorder %s44, 2
      %p560 = por %p558, %p559
      %p562 = scmp.ne.s32.totalorder %s545, %s561
      %p563 = scmp.eq.s32.totalorder %s44, 0
      %p564 = por %p562, %p563
      %p565 = scmp.le.s32.totalorder 1, %s38
      %p566 = scmp.lt.s32.totalorder %s38, 4
      %p567 = pnand %p565, %p566
      %p568 = pneg %p567
      // Predicated region
      $region9: #{tpu_custom_call.1} parent=5 // pred_check
        _
      $region10: #{tpu_custom_call.1} parent=5 // pred_check_branch
        %570 = sbr.rel (%p567) target = $region12
      $region11: #{tpu_custom_call.1} parent=5 // pred_region
        %s571 = ssub.s32 %s38, 1
        // Predicated region
        $region13: #{tpu_custom_call.1} parent=11 // pred_check
          %p572 = pneg %p111
        $region14: #{tpu_custom_call.1} parent=11 // pred_check_branch
          %574 = sbr.rel (%p572) target = $region16
        $region15: #{tpu_custom_call.1} parent=11 // pred_region
          _
        $region16: #{tpu_custom_call.1} parent=11 // pred_fallthru
          _
        // Predicated region
        $region17: #{tpu_custom_call.1} parent=11 // pred_check
          %p575 = pneg %p132
        $region18: #{tpu_custom_call.1} parent=11 // pred_check_branch
          %577 = sbr.rel (%p575) target = $region20
        $region19: #{tpu_custom_call.1} parent=11 // pred_region
          _
        $region20: #{tpu_custom_call.1} parent=11 // pred_fallthru
          _
        // Predicated region
        $region21: #{tpu_custom_call.1} parent=11 // pred_check
          %p578 = pneg %p153
        $region22: #{tpu_custom_call.1} parent=11 // pred_check_branch
          %580 = sbr.rel (%p578) target = $region24
        $region23: #{tpu_custom_call.1} parent=11 // pred_region
          _
        $region24: #{tpu_custom_call.1} parent=11 // pred_fallthru
          _
        // Predicated region
        $region25: #{tpu_custom_call.1} parent=11 // pred_check
          %p581 = pneg %p174
        $region26: #{tpu_custom_call.1} parent=11 // pred_check_branch
          %583 = sbr.rel (%p581) target = $region28
        $region27: #{tpu_custom_call.1} parent=11 // pred_region
          _
        $region28: #{tpu_custom_call.1} parent=11 // pred_fallthru
          _
        // Predicated region
        $region29: #{tpu_custom_call.1} parent=11 // pred_check
          %p584 = pneg %p195
        $region30: #{tpu_custom_call.1} parent=11 // pred_check_branch
          %586 = sbr.rel (%p584) target = $region32
        $region31: #{tpu_custom_call.1} parent=11 // pred_region
          _
        $region32: #{tpu_custom_call.1} parent=11 // pred_fallthru
          _
        // Predicated region
        $region33: #{tpu_custom_call.1} parent=11 // pred_check
          %p587 = pneg %p216
        $region34: #{tpu_custom_call.1} parent=11 // pred_check_branch
          %589 = sbr.rel (%p587) target = $region36
        $region35: #{tpu_custom_call.1} parent=11 // pred_region
          _
        $region36: #{tpu_custom_call.1} parent=11 // pred_fallthru
          _
        // Predicated region
        $region37: #{tpu_custom_call.1} parent=11 // pred_check
          %p590 = pneg %p237
        $region38: #{tpu_custom_call.1} parent=11 // pred_check_branch
          %592 = sbr.rel (%p590) target = $region40
        $region39: #{tpu_custom_call.1} parent=11 // pred_region
          _
        $region40: #{tpu_custom_call.1} parent=11 // pred_fallthru
          _
        // Predicated region
        $region41: #{tpu_custom_call.1} parent=11 // pred_check
          %p593 = pneg %p258
        $region42: #{tpu_custom_call.1} parent=11 // pred_check_branch
          %595 = sbr.rel (%p593) target = $region44
        $region43: #{tpu_custom_call.1} parent=11 // pred_region
          _
        $region44: #{tpu_custom_call.1} parent=11 // pred_fallthru
          _
        // Predicated region
        $region45: #{tpu_custom_call.1} parent=11 // pred_check
          %p596 = pneg %p279
        $region46: #{tpu_custom_call.1} parent=11 // pred_check_branch
          %598 = sbr.rel (%p596) target = $region48
        $region47: #{tpu_custom_call.1} parent=11 // pred_region
          _
        $region48: #{tpu_custom_call.1} parent=11 // pred_fallthru
          _
        // Predicated region
        $region49: #{tpu_custom_call.1} parent=11 // pred_check
          %p599 = pneg %p300
        $region50: #{tpu_custom_call.1} parent=11 // pred_check_branch
          %601 = sbr.rel (%p599) target = $region52
        $region51: #{tpu_custom_call.1} parent=11 // pred_region
          _
        $region52: #{tpu_custom_call.1} parent=11 // pred_fallthru
          _
        // Predicated region
        $region53: #{tpu_custom_call.1} parent=11 // pred_check
          %p602 = pneg %p321
        $region54: #{tpu_custom_call.1} parent=11 // pred_check_branch
          %604 = sbr.rel (%p602) target = $region56
        $region55: #{tpu_custom_call.1} parent=11 // pred_region
          _
        $region56: #{tpu_custom_call.1} parent=11 // pred_fallthru
          _
        // Predicated region
        $region57: #{tpu_custom_call.1} parent=11 // pred_check
          %p605 = pneg %p342
        $region58: #{tpu_custom_call.1} parent=11 // pred_check_branch
          %607 = sbr.rel (%p605) target = $region60
        $region59: #{tpu_custom_call.1} parent=11 // pred_region
          _
        $region60: #{tpu_custom_call.1} parent=11 // pred_fallthru
          _
        // Predicated region
        $region61: #{tpu_custom_call.1} parent=11 // pred_check
          %p608 = pneg %p363
        $region62: #{tpu_custom_call.1} parent=11 // pred_check_branch
          %610 = sbr.rel (%p608) target = $region64
        $region63: #{tpu_custom_call.1} parent=11 // pred_region
          _
        $region64: #{tpu_custom_call.1} parent=11 // pred_fallthru
          _
        // Predicated region
        $region65: #{tpu_custom_call.1} parent=11 // pred_check
          %p611 = pneg %p384
        $region66: #{tpu_custom_call.1} parent=11 // pred_check_branch
          %613 = sbr.rel (%p611) target = $region68
        $region67: #{tpu_custom_call.1} parent=11 // pred_region
          _
        $region68: #{tpu_custom_call.1} parent=11 // pred_fallthru
          _
        // Predicated region
        $region69: #{tpu_custom_call.1} parent=11 // pred_check
          %p614 = pneg %p405
        $region70: #{tpu_custom_call.1} parent=11 // pred_check_branch
          %616 = sbr.rel (%p614) target = $region72
        $region71: #{tpu_custom_call.1} parent=11 // pred_region
          _
        $region72: #{tpu_custom_call.1} parent=11 // pred_fallthru
          _
        // Predicated region
        $region73: #{tpu_custom_call.1} parent=11 // pred_check
          %p617 = pneg %p426
        $region74: #{tpu_custom_call.1} parent=11 // pred_check_branch
          %619 = sbr.rel (%p617) target = $region76
        $region75: #{tpu_custom_call.1} parent=11 // pred_region
          _
        $region76: #{tpu_custom_call.1} parent=11 // pred_fallthru
          _
        // Predicated region
        $region77: #{tpu_custom_call.1} parent=11 // pred_check
          %p620 = pneg %p447
        $region78: #{tpu_custom_call.1} parent=11 // pred_check_branch
          %622 = sbr.rel (%p620) target = $region80
        $region79: #{tpu_custom_call.1} parent=11 // pred_region
          _
        $region80: #{tpu_custom_call.1} parent=11 // pred_fallthru
          _
        // Predicated region
        $region81: #{tpu_custom_call.1} parent=11 // pred_check
          %p623 = pneg %p468
        $region82: #{tpu_custom_call.1} parent=11 // pred_check_branch
          %625 = sbr.rel (%p623) target = $region84
        $region83: #{tpu_custom_call.1} parent=11 // pred_region
          _
        $region84: #{tpu_custom_call.1} parent=11 // pred_fallthru
          _
        // Predicated region
        $region85: #{tpu_custom_call.1} parent=11 // pred_check
          %p626 = pneg %p489
        $region86: #{tpu_custom_call.1} parent=11 // pred_check_branch
          %628 = sbr.rel (%p626) target = $region88
        $region87: #{tpu_custom_call.1} parent=11 // pred_region
          _
        $region88: #{tpu_custom_call.1} parent=11 // pred_fallthru
          _
        // Predicated region
        $region89: #{tpu_custom_call.1} parent=11 // pred_check
          %p629 = pneg %p510
        $region90: #{tpu_custom_call.1} parent=11 // pred_check_branch
          %631 = sbr.rel (%p629) target = $region92
        $region91: #{tpu_custom_call.1} parent=11 // pred_region
          _
        $region92: #{tpu_custom_call.1} parent=11 // pred_fallthru
          _
        // Predicated region
        $region93: #{tpu_custom_call.1} parent=11 // pred_check
          %p632 = pneg %p531
        $region94: #{tpu_custom_call.1} parent=11 // pred_check_branch
          %634 = sbr.rel (%p632) target = $region96
        $region95: #{tpu_custom_call.1} parent=11 // pred_region
          _
        $region96: #{tpu_custom_call.1} parent=11 // pred_fallthru
          _
      $region12: #{tpu_custom_call.1} parent=5 // pred_fallthru
        _
      %p635 = scmp.lt.s32.totalorder %s38, 3
      // Predicated region
      $region97: #{tpu_custom_call.1} parent=5 // pred_check
        %p636 = pneg %p635
      $region98: #{tpu_custom_call.1} parent=5 // pred_check_branch
        %638 = sbr.rel (%p636) target = $region100
      $region99: #{tpu_custom_call.1} parent=5 // pred_region
        // Predicated region
        $region101: #{tpu_custom_call.1} parent=99 // pred_check
          %p639 = pneg %p58
        $region102: #{tpu_custom_call.1} parent=99 // pred_check_branch
          %641 = sbr.rel (%p639) target = $region104
        $region103: #{tpu_custom_call.1} parent=99 // pred_region
          %p642 = scmp.lt.s32.totalorder %s38, 2
          %s643 = scalar_select %p642, %s38, 2
          %s644 = smul.addr %s643, 8
          %s645 = scalar_lea.vmem %s0, %s644
        $region104: #{tpu_custom_call.1} parent=99 // pred_fallthru
          _
        // Predicated region
        $region105: #{tpu_custom_call.1} parent=99 // pred_check
          %p646 = pneg %p84
        $region106: #{tpu_custom_call.1} parent=99 // pred_check_branch
          %648 = sbr.rel (%p646) target = $region108
        $region107: #{tpu_custom_call.1} parent=99 // pred_region
          %p649 = scmp.lt.s32.totalorder %s38, 2
          %s650 = scalar_select %p649, %s38, 2
          %s651 = smul.addr %s650, 8
          %s652 = scalar_lea.vmem %s1, %s651
        $region108: #{tpu_custom_call.1} parent=99 // pred_fallthru
          _
      $region100: #{tpu_custom_call.1} parent=5 // pred_fallthru
        _
      %p653 = scmp.le.s32.totalorder 1, %s38
      %p654 = scmp.lt.s32.totalorder %s38, 4
      %p655 = pnand %p653, %p654
      %p656 = pneg %p655
      // Predicated region
      $region109: #{tpu_custom_call.1} parent=5 // pred_check
        _
      $region110: #{tpu_custom_call.1} parent=5 // pred_check_branch
        %658 = sbr.rel (%p655) target = $region112
      $region111: #{tpu_custom_call.1} parent=5 // pred_region
        %s659 = ssub.s32 %s38, 1
        %p660 = scmp.lt.s32.totalorder %s43, 2
        %s661 = scalar_select %p660, %s43, 2
        %s662 = smul.addr %s661, 8
        %s663 = scalar_lea.vmem %s0, %s662
        %p664 = pneg %p64
        %p665 = pneg %p61
        %p666 = scmp.lt.s32.totalorder %s43, 2
        %s667 = scalar_select %p666, %s43, 2
        %s668 = smul.addr %s667, 8
        %s669 = scalar_lea.vmem %s1, %s668
        %p670 = pneg %p90
        %p671 = pneg %p87
        %p672 = pneg %p111
        %p673 = pneg %p108
        %p674 = pneg %p132
        %p675 = pneg %p129
        %p676 = pneg %p153
        %p677 = pneg %p150
        %p678 = pneg %p174
        %p679 = pneg %p171
        %p680 = pneg %p195
        %p681 = pneg %p192
        %p682 = pneg %p216
        %p683 = pneg %p213
        %p684 = pneg %p237
        %p685 = pneg %p234
        %p686 = pneg %p258
        %p687 = pneg %p255
        %p688 = pneg %p279
        %p689 = pneg %p276
        %p690 = pneg %p300
        %p691 = pneg %p297
        %p692 = pneg %p321
        %p693 = pneg %p318
        %p694 = pneg %p342
        %p695 = pneg %p339
        %p696 = pneg %p363
        %p697 = pneg %p360
        %p698 = pneg %p384
        %p699 = pneg %p381
        %p700 = pneg %p405
        %p701 = pneg %p402
        %p702 = pneg %p426
        %p703 = pneg %p423
        %p704 = pneg %p447
        %p705 = pneg %p444
        %p706 = pneg %p468
        %p707 = pneg %p465
        %p708 = pneg %p489
        %p709 = pneg %p486
        %p710 = pneg %p510
        %p711 = pneg %p507
        %p712 = pneg %p531
        %p713 = pneg %p528
        %p714 = pneg %p557
        %p715 = pneg %p554
        %s716 = sand.u32 %s544, 1
        %s717 = scalar_lea.sflag [#allocation6], %s716
        %s718 = sand.u32 %s544, 1
        %s719 = smul.addr %s718, 8
        %s720 = scalar_lea.vmem [#allocation5], %s719
        %p721 = scmp.lt.s32.totalorder %s43, 2
        %s722 = scalar_select %p721, %s43, 2
        %s723 = smul.addr %s722, 8
        %s724 = scalar_lea.vmem %s0, %s723
        %p725 = scmp.lt.s32.totalorder %s43, 2
        %s726 = scalar_select %p725, %s43, 2
        %s727 = smul.addr %s726, 8
        %s728 = scalar_lea.vmem %s1, %s727
        %v730 = vld [vmem:[%s724] sm:$0xff]
        %v731 = vld [vmem:[%s728] sm:$0xff]
        %v732 = vpack.c.bf16 %v730, %v730
        %v733 = vpack.c.bf16 %v731, %v731
        %v734 = vand.u32 2147483647, %v730
        %735 = vadd.xlane.f32.xlu0 %v730
        %v736 = vpop.xlane.xlu0 %735
        %v737 = vmul.f32 %v730, %v730
        %738 = vadd.xlane.f32.xlu0 %v737
        %v739 = vpop.xlane.xlu0 %738
        %740 = vadd.xlane.f32.xlu0 %v734
        %v741 = vpop.xlane.xlu0 %740
        %742 = vmax.xlane.f32.xlu0 %v734
        %v743 = vpop.xlane.xlu0 %742
        %v744 = vsub.f32 %v734, %v743
        %v745 = vmul.f32 %v744, 1.442695
        %v746 = vpow.pop %v745
        %747 = vadd.xlane.f32.xlu0 %v746
        %v748 = vpop.xlane.xlu0 %747
        %v749 = vmul.f32 %v746, %v744
        %750 = vadd.xlane.f32.xlu0 %v749
        %v751 = vpop.xlane.xlu0 %750
        %vm752 = vcmp.lt.f32.partialorder %v734, 0.01
        %v753 = vsel %vm752, 1, 0
        %v754 = vcvt.s32.f32 %v753
        %755 = vadd.xlane.f32.xlu0 %v754
        %v756 = vpop.xlane.xlu0 %755
        %v757 = vand.u32 2147483647, %v731
        %758 = vadd.xlane.f32.xlu0 %v731
        %v759 = vpop.xlane.xlu0 %758
        %v760 = vmul.f32 %v731, %v731
        %761 = vadd.xlane.f32.xlu0 %v760
        %v762 = vpop.xlane.xlu0 %761
        %763 = vadd.xlane.f32.xlu0 %v757
        %v764 = vpop.xlane.xlu0 %763
        %765 = vmax.xlane.f32.xlu0 %v757
        %v766 = vpop.xlane.xlu0 %765
        %v767 = vsub.f32 %v757, %v766
        %v768 = vmul.f32 %v767, 1.442695
        %v769 = vpow.pop %v768
        %770 = vadd.xlane.f32.xlu0 %v769
        %v771 = vpop.xlane.xlu0 %770
        %v772 = vmul.f32 %v769, %v767
        %773 = vadd.xlane.f32.xlu0 %v772
        %v774 = vpop.xlane.xlu0 %773
        %vm775 = vcmp.lt.f32.partialorder %v757, 0.01
        %v776 = vsel %vm775, 1, 0
        %v777 = vcvt.s32.f32 %v776
        %778 = vadd.xlane.f32.xlu0 %v777
        %v779 = vpop.xlane.xlu0 %778
        %v780 = vmul.f32 %v730, %v731
        %781 = vadd.xlane.f32.xlu0 %v780
        %v782 = vpop.xlane.xlu0 %781
        %v783 = vrsqrt.pop %v739
        %v784 = vmul.f32 %v783, %v739
        %v785 = vmul.f32 %v784, %v783
        %v786 = vmul.f32 0.5, %v785
        %v787 = vsub.f32 1.5, %v786
        %v788 = vmul.f32 %v783, %v787
        %v789 = vmul.f32 %v739, %v788
        %vm790 = vcmp.eq.f32.partialorder %v739, inf
        %v791 = vsel %vm790, %v739, %v789
        %vm792 = vcmp.eq.f32.partialorder %v739, 0.0
        %v793 = vand.u32 %v739, 2147483648
        %v794 = vsel %vm792, %v793, %v791
        %v795 = vsub.f32 %v794, 11.313708
        %v796 = vand.u32 2147483647, %v795
        %v797 = vsub.f32 0.0, %v796
        %v798 = vrcp.pop 11.313708
        %v799 = vmul.f32 11.313708, %v798
        %v800 = vsub.f32 1.0, %v799
        %v801 = vmul.f32 %v798, %v800
        %v802 = vadd.f32 %v798, %v801
        %vm803 = vweird.f32 %v798
        %v804 = vsel %vm803, %v798, %v802
        %v805 = vmul.f32 %v797, %v804
        %v806 = vmul.f32 %v805, 1.442695
        %v807 = vpow.pop %v806
        %v808 = vlog2.pop %v748
        %v809 = vmul.f32 %v808, 0.6931472
        %v810 = vrcp.pop %v748
        %v811 = vmul.f32 %v748, %v810
        %v812 = vsub.f32 1.0, %v811
        %v813 = vmul.f32 %v810, %v812
        %v814 = vadd.f32 %v810, %v813
        %vm815 = vweird.f32 %v748
        %vm816 = vweird.f32 %v810
        %vm817 = vmor %vm815, %vm816
        %v818 = vsel %vm817, %v810, %v814
        %v819 = vand.u32 2147483647, %v748
        %vm820 = vcmp.eq.f32.partialorder %v819, 8.507059e+37
        %v821 = vand.u32 %v748, 2147483648
        %v822 = vor.u32 1.1754944e-38, %v821
        %v823 = vsel %vm820, %v822, %v818
        %v824 = vmul.f32 %v751, %v823
        %v825 = vsub.f32 %v809, %v824
        %v826 = vrcp.pop 4.8520303
        %v827 = vmul.f32 4.8520303, %v826
        %v828 = vsub.f32 1.0, %v827
        %v829 = vmul.f32 %v826, %v828
        %v830 = vadd.f32 %v826, %v829
        %vm831 = vweird.f32 %v826
        %v832 = vsel %vm831, %v826, %v830
        %v833 = vmul.f32 %v825, %v832
        %v834 = vmul.f32 %v736, %v736
        %v835 = vrcp.pop 128.0
        %v836 = vmul.f32 128.0, %v835
        %v837 = vsub.f32 1.0, %v836
        %v838 = vmul.f32 %v835, %v837
        %v839 = vadd.f32 %v835, %v838
        %vm840 = vweird.f32 %v835
        %v841 = vsel %vm840, %v835, %v839
        %v842 = vmul.f32 %v834, %v841
        %v843 = vsub.f32 %v739, %v842
        %v844 = vrcp.pop 127.0
        %v845 = vmul.f32 127.0, %v844
        %v846 = vsub.f32 1.0, %v845
        %v847 = vmul.f32 %v844, %v846
        %v848 = vadd.f32 %v844, %v847
        %vm849 = vweird.f32 %v844
        %v850 = vsel %vm849, %v844, %v848
        %v851 = vmul.f32 %v843, %v850
        %v852 = vmul.f32 %v741, %v841
        %v853 = vmax.f32 %v852, 1e-20
        %v854 = vrcp.pop %v853
        %v855 = vmul.f32 %v853, %v854
        %v856 = vsub.f32 1.0, %v855
        %v857 = vmul.f32 %v854, %v856
        %v858 = vadd.f32 %v854, %v857
        %vm859 = vweird.f32 %v853
        %vm860 = vweird.f32 %v854
        %vm861 = vmor %vm859, %vm860
        %v862 = vsel %vm861, %v854, %v858
        %v863 = vand.u32 2147483647, %v853
        %vm864 = vcmp.eq.f32.partialorder %v863, 8.507059e+37
        %v865 = vand.u32 %v853, 2147483648
        %v866 = vor.u32 1.1754944e-38, %v865
        %v867 = vsel %vm864, %v866, %v862
        %v868 = vmul.f32 %v851, %v867
        %v869 = vxor.u32 %v868, 2147483648
        %v870 = vmul.f32 %v869, 1.442695
        %v871 = vpow.pop %v870
        %v872 = vadd.f32 %v871, 1.0
        %v873 = vrcp.pop %v872
        %v874 = vmul.f32 %v872, %v873
        %v875 = vsub.f32 1.0, %v874
        %v876 = vmul.f32 %v873, %v875
        %v877 = vadd.f32 %v873, %v876
        %vm878 = vweird.f32 %v872
        %vm879 = vweird.f32 %v873
        %vm880 = vmor %vm878, %vm879
        %v881 = vsel %vm880, %v873, %v877
        %v882 = vand.u32 2147483647, %v872
        %vm883 = vcmp.eq.f32.partialorder %v882, 8.507059e+37
        %v884 = vand.u32 %v872, 2147483648
        %v885 = vor.u32 1.1754944e-38, %v884
        %v886 = vsel %vm883, %v885, %v881
        %v887 = vmul.f32 1.0, %v886
        %v888 = vmul.f32 %v756, %v841
        %v889 = vsub.f32 %v888, 0.1
        %v890 = vand.u32 2147483647, %v889
        %v891 = vsub.f32 0.0, %v890
        %v892 = vrcp.pop 0.1
        %v893 = vmul.f32 0.1, %v892
        %v894 = vsub.f32 1.0, %v893
        %v895 = vmul.f32 %v892, %v894
        %v896 = vadd.f32 %v892, %v895
        %vm897 = vweird.f32 %v892
        %v898 = vsel %vm897, %v892, %v896
        %v899 = vmul.f32 %v891, %v898
        %v900 = vmul.f32 %v899, 1.442695
        %v901 = vpow.pop %v900
        %v902 = vrsqrt.pop %v762
        %v903 = vmul.f32 %v902, %v762
        %v904 = vmul.f32 %v903, %v902
        %v905 = vmul.f32 0.5, %v904
        %v906 = vsub.f32 1.5, %v905
        %v907 = vmul.f32 %v902, %v906
        %v908 = vmul.f32 %v762, %v907
        %vm909 = vcmp.eq.f32.partialorder %v762, inf
        %v910 = vsel %vm909, %v762, %v908
        %vm911 = vcmp.eq.f32.partialorder %v762, 0.0
        %v912 = vand.u32 %v762, 2147483648
        %v913 = vsel %vm911, %v912, %v910
        %v914 = vsub.f32 %v913, 11.313708
        %v915 = vand.u32 2147483647, %v914
        %v916 = vsub.f32 0.0, %v915
        %v917 = vmul.f32 %v916, %v804
        %v918 = vmul.f32 %v917, 1.442695
        %v919 = vpow.pop %v918
        %v920 = vlog2.pop %v771
        %v921 = vmul.f32 %v920, 0.6931472
        %v922 = vrcp.pop %v771
        %v923 = vmul.f32 %v771, %v922
        %v924 = vsub.f32 1.0, %v923
        %v925 = vmul.f32 %v922, %v924
        %v926 = vadd.f32 %v922, %v925
        %vm927 = vweird.f32 %v771
        %vm928 = vweird.f32 %v922
        %vm929 = vmor %vm927, %vm928
        %v930 = vsel %vm929, %v922, %v926
        %v931 = vand.u32 2147483647, %v771
        %vm932 = vcmp.eq.f32.partialorder %v931, 8.507059e+37
        %v933 = vand.u32 %v771, 2147483648
        %v934 = vor.u32 1.1754944e-38, %v933
        %v935 = vsel %vm932, %v934, %v930
        %v936 = vmul.f32 %v774, %v935
        %v937 = vsub.f32 %v921, %v936
        %v938 = vmul.f32 %v937, %v832
        %v939 = vmul.f32 %v759, %v759
        %v940 = vmul.f32 %v939, %v841
        %v941 = vsub.f32 %v762, %v940
        %v942 = vmul.f32 %v941, %v850
        %v943 = vmul.f32 %v764, %v841
        %v944 = vmax.f32 %v943, 1e-20
        %v945 = vrcp.pop %v944
        %v946 = vmul.f32 %v944, %v945
        %v947 = vsub.f32 1.0, %v946
        %v948 = vmul.f32 %v945, %v947
        %v949 = vadd.f32 %v945, %v948
        %vm950 = vweird.f32 %v944
        %vm951 = vweird.f32 %v945
        %vm952 = vmor %vm950, %vm951
        %v953 = vsel %vm952, %v945, %v949
        %v954 = vand.u32 2147483647, %v944
        %vm955 = vcmp.eq.f32.partialorder %v954, 8.507059e+37
        %v956 = vand.u32 %v944, 2147483648
        %v957 = vor.u32 1.1754944e-38, %v956
        %v958 = vsel %vm955, %v957, %v953
        %v959 = vmul.f32 %v942, %v958
        %v960 = vxor.u32 %v959, 2147483648
        %v961 = vmul.f32 %v960, 1.442695
        %v962 = vpow.pop %v961
        %v963 = vadd.f32 %v962, 1.0
        %v964 = vrcp.pop %v963
        %v965 = vmul.f32 %v963, %v964
        %v966 = vsub.f32 1.0, %v965
        %v967 = vmul.f32 %v964, %v966
        %v968 = vadd.f32 %v964, %v967
        %vm969 = vweird.f32 %v963
        %vm970 = vweird.f32 %v964
        %vm971 = vmor %vm969, %vm970
        %v972 = vsel %vm971, %v964, %v968
        %v973 = vand.u32 2147483647, %v963
        %vm974 = vcmp.eq.f32.partialorder %v973, 8.507059e+37
        %v975 = vand.u32 %v963, 2147483648
        %v976 = vor.u32 1.1754944e-38, %v975
        %v977 = vsel %vm974, %v976, %v972
        %v978 = vmul.f32 1.0, %v977
        %v979 = vmul.f32 %v779, %v841
        %v980 = vsub.f32 %v979, 0.1
        %v981 = vand.u32 2147483647, %v980
        %v982 = vsub.f32 0.0, %v981
        %v983 = vmul.f32 %v982, %v898
        %v984 = vmul.f32 %v983, 1.442695
        %v985 = vpow.pop %v984
        %v986 = vmax.f32 %v794, 1e-08
        %v987 = vmax.f32 %v913, 1e-08
        %v988 = vmul.f32 %v986, %v987
        %v989 = vrcp.pop %v988
        %v990 = vmul.f32 %v988, %v989
        %v991 = vsub.f32 1.0, %v990
        %v992 = vmul.f32 %v989, %v991
        %v993 = vadd.f32 %v989, %v992
        %vm994 = vweird.f32 %v988
        %vm995 = vweird.f32 %v989
        %vm996 = vmor %vm994, %vm995
        %v997 = vsel %vm996, %v989, %v993
        %v998 = vand.u32 2147483647, %v988
        %vm999 = vcmp.eq.f32.partialorder %v998, 8.507059e+37
        %v1000 = vand.u32 %v988, 2147483648
        %v1001 = vor.u32 1.1754944e-38, %v1000
        %v1002 = vsel %vm999, %v1001, %v997
        %v1003 = vmul.f32 %v782, %v1002
        %v1004 = vadd.f32 %v1003, 1.0
        %v1005 = vmul.f32 %v1004, 0.5
        %v1006 = vmul.f32 %v736, %v759
        %v1007 = vmul.f32 %v1006, %v841
        %v1008 = vsub.f32 %v782, %v1007
        %v1009 = vmul.f32 %v1008, %v1008
        %v1010 = vmul.f32 %v843, %v941
        %v1011 = vadd.f32 %v1010, 1e-08
        %v1012 = vrcp.pop %v1011
        %v1013 = vmul.f32 %v1011, %v1012
        %v1014 = vsub.f32 1.0, %v1013
        %v1015 = vmul.f32 %v1012, %v1014
        %v1016 = vadd.f32 %v1012, %v1015
        %vm1017 = vweird.f32 %v1011
        %vm1018 = vweird.f32 %v1012
        %vm1019 = vmor %vm1017, %vm1018
        %v1020 = vsel %vm1019, %v1012, %v1016
        %v1021 = vand.u32 2147483647, %v1011
        %vm1022 = vcmp.eq.f32.partialorder %v1021, 8.507059e+37
        %v1023 = vand.u32 %v1011, 2147483648
        %v1024 = vor.u32 1.1754944e-38, %v1023
        %v1025 = vsel %vm1022, %v1024, %v1020
        %v1026 = vmul.f32 %v1009, %v1025
        %v1027 = vadd.f32 %v739, %v762
        %v1028 = vmul.f32 %v782, 2.0
        %v1029 = vsub.f32 %v1027, %v1028
        %v1030 = vmax.f32 %v1029, 0.0
        %v1031 = vrsqrt.pop %v1030
        %v1032 = vmul.f32 %v1031, %v1030
        %v1033 = vmul.f32 %v1032, %v1031
        %v1034 = vmul.f32 0.5, %v1033
        %v1035 = vsub.f32 1.5, %v1034
        %v1036 = vmul.f32 %v1031, %v1035
        %v1037 = vmul.f32 %v1030, %v1036
        %vm1038 = vcmp.eq.f32.partialorder %v1030, inf
        %v1039 = vsel %vm1038, %v1030, %v1037
        %vm1040 = vcmp.eq.f32.partialorder %v1030, 0.0
        %v1041 = vand.u32 %v1030, 2147483648
        %v1042 = vsel %vm1040, %v1041, %v1039
        %v1043 = vadd.f32 %v794, %v913
        %v1044 = vadd.f32 %v1043, 1e-08
        %v1045 = vrcp.pop %v1044
        %v1046 = vmul.f32 %v1044, %v1045
        %v1047 = vsub.f32 1.0, %v1046
        %v1048 = vmul.f32 %v1045, %v1047
        %v1049 = vadd.f32 %v1045, %v1048
        %vm1050 = vweird.f32 %v1044
        %vm1051 = vweird.f32 %v1045
        %vm1052 = vmor %vm1050, %vm1051
        %v1053 = vsel %vm1052, %v1045, %v1049
        %v1054 = vand.u32 2147483647, %v1044
        %vm1055 = vcmp.eq.f32.partialorder %v1054, 8.507059e+37
        %v1056 = vand.u32 %v1044, 2147483648
        %v1057 = vor.u32 1.1754944e-38, %v1056
        %v1058 = vsel %vm1055, %v1057, %v1053
        %v1059 = vmul.f32 %v1042, %v1058
        %v1060 = vsub.f32 1.0, %v1059
        %v1061 = vld [vmem:[%s2] sm:$0xff]
        %v1062 = vld [vmem:[%s2 + $0x8] sm:$0xff]
        %v1063 = vld [vmem:[%s2 + $0x10] sm:$0xff]
        %v1064 = vld [vmem:[%s2 + $0x18] sm:$0xff]
        %v1065 = vld [vmem:[%s2 + $0x20] sm:$0xff]
        %v1066 = vld [vmem:[%s2 + $0x28] sm:$0xff]
        %v1067 = vld [vmem:[%s2 + $0x30] sm:$0xff]
        %v1068 = vld [vmem:[%s2 + $0x38] sm:$0xff]
        %v1069 = vld [vmem:[%s2 + $0x40] sm:$0xff]
        %v1070 = vld [vmem:[%s2 + $0x48] sm:$0xff]
        %v1071 = vld [vmem:[%s2 + $0x50] sm:$0xff]
        %v1072 = vld [vmem:[%s2 + $0x58] sm:$0xff]
        %v1073 = vld [vmem:[%s2 + $0x60] sm:$0xff]
        %v1074 = vld [vmem:[%s2 + $0x68] sm:$0xff]
        %v1075 = vld [vmem:[%s2 + $0x70] sm:$0xff]
        %v1076 = vld [vmem:[%s2 + $0x78] sm:$0xff]
        %v1093 = vunpack.c.l.b16 %v1061
        %v1094 = vunpack.c.h.b16 %v1061
        %v1095 = vunpack.c.l.b16 %v1062
        %v1096 = vunpack.c.h.b16 %v1062
        %v1097 = vunpack.c.l.b16 %v1063
        %v1098 = vunpack.c.h.b16 %v1063
        %v1099 = vunpack.c.l.b16 %v1064
        %v1100 = vunpack.c.h.b16 %v1064
        %v1101 = vunpack.c.l.b16 %v1065
        %v1102 = vunpack.c.h.b16 %v1065
        %v1103 = vunpack.c.l.b16 %v1066
        %v1104 = vunpack.c.h.b16 %v1066
        %v1105 = vunpack.c.l.b16 %v1067
        %v1106 = vunpack.c.h.b16 %v1067
        %v1107 = vunpack.c.l.b16 %v1068
        %v1108 = vunpack.c.h.b16 %v1068
        %v1109 = vunpack.c.l.b16 %v1069
        %v1110 = vunpack.c.h.b16 %v1069
        %v1111 = vunpack.c.l.b16 %v1070
        %v1112 = vunpack.c.h.b16 %v1070
        %v1113 = vunpack.c.l.b16 %v1071
        %v1114 = vunpack.c.h.b16 %v1071
        %v1115 = vunpack.c.l.b16 %v1072
        %v1116 = vunpack.c.h.b16 %v1072
        %v1117 = vunpack.c.l.b16 %v1073
        %v1118 = vunpack.c.h.b16 %v1073
        %v1119 = vunpack.c.l.b16 %v1074
        %v1120 = vunpack.c.h.b16 %v1074
        %v1121 = vunpack.c.l.b16 %v1075
        %v1122 = vunpack.c.h.b16 %v1075
        %v1123 = vunpack.c.l.b16 %v1076
        %v1124 = vunpack.c.h.b16 %v1076
        %v1125 = vpack.c.b16 %v1095, %v1093
        %v1126 = vpack.c.b16 %v1096, %v1094
        %v1127 = vpack.c.b16 %v1099, %v1097
        %v1128 = vpack.c.b16 %v1100, %v1098
        %v1129 = vpack.c.b16 %v1103, %v1101
        %v1130 = vpack.c.b16 %v1104, %v1102
        %v1131 = vpack.c.b16 %v1107, %v1105
        %v1132 = vpack.c.b16 %v1108, %v1106
        %v1133 = vpack.c.b16 %v1111, %v1109
        %v1134 = vpack.c.b16 %v1112, %v1110
        %v1135 = vpack.c.b16 %v1115, %v1113
        %v1136 = vpack.c.b16 %v1116, %v1114
        %v1137 = vpack.c.b16 %v1119, %v1117
        %v1138 = vpack.c.b16 %v1120, %v1118
        %v1139 = vpack.c.b16 %v1123, %v1121
        %v1140 = vpack.c.b16 %v1124, %v1122
        %1157 = vmatpush.bf16.msra.mxu0 %v1139
        %1158 = vmatpush.bf16.msra.mxu0 %v1137
        %1159 = vmatpush.bf16.msra.mxu0 %v1135
        %1160 = vmatpush.bf16.msra.mxu0 %v1133
        %1161 = vmatpush.bf16.msra.mxu0 %v1131
        %1162 = vmatpush.bf16.msra.mxu0 %v1129
        %1163 = vmatpush.bf16.msra.mxu0 %v1127
        %1164 = vmatpush.bf16.msra.mxu0 %v1125
        %1165 = vmatmul.bf16.gmra.mxu0 %v732
        %v1166 = vpop.f32.mrf.mxu0
        %v1167 = vadd.f32 0.0, %v1166
        %v1168 = vpop.f32.mrf.mxu0
        %1169 = vdwg.mxu0
        %1170 = vmatpush.bf16.msra.mxu0 %v1140
        %1171 = vmatpush.bf16.msra.mxu0 %v1138
        %1172 = vmatpush.bf16.msra.mxu0 %v1136
        %1173 = vmatpush.bf16.msra.mxu0 %v1134
        %1174 = vmatpush.bf16.msra.mxu0 %v1132
        %1175 = vmatpush.bf16.msra.mxu0 %v1130
        %1176 = vmatpush.bf16.msra.mxu0 %v1128
        %1177 = vmatpush.bf16.msra.mxu0 %v1126
        %1178 = vmatmul.bf16.gmra.mxu0 %v732
        %v1179 = vpop.f32.mrf.mxu0
        %v1180 = vadd.f32 0.0, %v1179
        %v1181 = vpop.f32.mrf.mxu0
        %1182 = vdwg.mxu0
        %v1183 = vld [vmem:[%s8] sm:$0xff]
        %v1184 = vld [vmem:[%s8 + $0x8] sm:$0xff]
        %v1185 = vld [vmem:[%s8 + $0x10] sm:$0xff]
        %v1186 = vld [vmem:[%s8 + $0x18] sm:$0xff]
        %v1187 = vld [vmem:[%s8 + $0x20] sm:$0xff]
        %v1188 = vld [vmem:[%s8 + $0x28] sm:$0xff]
        %v1189 = vld [vmem:[%s8 + $0x30] sm:$0xff]
        %v1190 = vld [vmem:[%s8 + $0x38] sm:$0xff]
        %v1191 = vld [vmem:[%s8 + $0x40] sm:$0xff]
        %v1192 = vld [vmem:[%s8 + $0x48] sm:$0xff]
        %v1193 = vld [vmem:[%s8 + $0x50] sm:$0xff]
        %v1194 = vld [vmem:[%s8 + $0x58] sm:$0xff]
        %v1195 = vld [vmem:[%s8 + $0x60] sm:$0xff]
        %v1196 = vld [vmem:[%s8 + $0x68] sm:$0xff]
        %v1197 = vld [vmem:[%s8 + $0x70] sm:$0xff]
        %v1198 = vld [vmem:[%s8 + $0x78] sm:$0xff]
        %v1215 = vunpack.c.l.b16 %v1183
        %v1216 = vunpack.c.h.b16 %v1183
        %v1217 = vunpack.c.l.b16 %v1184
        %v1218 = vunpack.c.h.b16 %v1184
        %v1219 = vunpack.c.l.b16 %v1185
        %v1220 = vunpack.c.h.b16 %v1185
        %v1221 = vunpack.c.l.b16 %v1186
        %v1222 = vunpack.c.h.b16 %v1186
        %v1223 = vunpack.c.l.b16 %v1187
        %v1224 = vunpack.c.h.b16 %v1187
        %v1225 = vunpack.c.l.b16 %v1188
        %v1226 = vunpack.c.h.b16 %v1188
        %v1227 = vunpack.c.l.b16 %v1189
        %v1228 = vunpack.c.h.b16 %v1189
        %v1229 = vunpack.c.l.b16 %v1190
        %v1230 = vunpack.c.h.b16 %v1190
        %v1231 = vunpack.c.l.b16 %v1191
        %v1232 = vunpack.c.h.b16 %v1191
        %v1233 = vunpack.c.l.b16 %v1192
        %v1234 = vunpack.c.h.b16 %v1192
        %v1235 = vunpack.c.l.b16 %v1193
        %v1236 = vunpack.c.h.b16 %v1193
        %v1237 = vunpack.c.l.b16 %v1194
        %v1238 = vunpack.c.h.b16 %v1194
        %v1239 = vunpack.c.l.b16 %v1195
        %v1240 = vunpack.c.h.b16 %v1195
        %v1241 = vunpack.c.l.b16 %v1196
        %v1242 = vunpack.c.h.b16 %v1196
        %v1243 = vunpack.c.l.b16 %v1197
        %v1244 = vunpack.c.h.b16 %v1197
        %v1245 = vunpack.c.l.b16 %v1198
        %v1246 = vunpack.c.h.b16 %v1198
        %v1247 = vpack.c.b16 %v1217, %v1215
        %v1248 = vpack.c.b16 %v1218, %v1216
        %v1249 = vpack.c.b16 %v1221, %v1219
        %v1250 = vpack.c.b16 %v1222, %v1220
        %v1251 = vpack.c.b16 %v1225, %v1223
        %v1252 = vpack.c.b16 %v1226, %v1224
        %v1253 = vpack.c.b16 %v1229, %v1227
        %v1254 = vpack.c.b16 %v1230, %v1228
        %v1255 = vpack.c.b16 %v1233, %v1231
        %v1256 = vpack.c.b16 %v1234, %v1232
        %v1257 = vpack.c.b16 %v1237, %v1235
        %v1258 = vpack.c.b16 %v1238, %v1236
        %v1259 = vpack.c.b16 %v1241, %v1239
        %v1260 = vpack.c.b16 %v1242, %v1240
        %v1261 = vpack.c.b16 %v1245, %v1243
        %v1262 = vpack.c.b16 %v1246, %v1244
        %1279 = vmatpush.bf16.msra.mxu0 %v1261
        %1280 = vmatpush.bf16.msra.mxu0 %v1259
        %1281 = vmatpush.bf16.msra.mxu0 %v1257
        %1282 = vmatpush.bf16.msra.mxu0 %v1255
        %1283 = vmatpush.bf16.msra.mxu0 %v1253
        %1284 = vmatpush.bf16.msra.mxu0 %v1251
        %1285 = vmatpush.bf16.msra.mxu0 %v1249
        %1286 = vmatpush.bf16.msra.mxu0 %v1247
        %1287 = vmatmul.bf16.gmra.mxu0 %v733
        %v1288 = vpop.f32.mrf.mxu0
        %v1289 = vadd.f32 0.0, %v1288
        %v1290 = vpop.f32.mrf.mxu0
        %1291 = vdwg.mxu0
        %1292 = vmatpush.bf16.msra.mxu0 %v1262
        %1293 = vmatpush.bf16.msra.mxu0 %v1260
        %1294 = vmatpush.bf16.msra.mxu0 %v1258
        %1295 = vmatpush.bf16.msra.mxu0 %v1256
        %1296 = vmatpush.bf16.msra.mxu0 %v1254
        %1297 = vmatpush.bf16.msra.mxu0 %v1252
        %1298 = vmatpush.bf16.msra.mxu0 %v1250
        %1299 = vmatpush.bf16.msra.mxu0 %v1248
        %1300 = vmatmul.bf16.gmra.mxu0 %v733
        %v1301 = vpop.f32.mrf.mxu0
        %v1302 = vadd.f32 0.0, %v1301
        %v1303 = vpop.f32.mrf.mxu0
        %1304 = vdwg.mxu0
        %v1305 = vld [vmem:[%s3] sm:$0x1]
        %v1307 = vperm.slane %v1305, 0
        %v1309 = vadd.f32 %v1180, %v1307
        %v1310 = vmax.f32 %v1309, 0.0
        %v1311 = vpack.c.bf16 %v1310, %v1310
        %v1312 = vld [vmem:[%s4] sm:$0xf]
        %v1313 = vld [vmem:[%s4 + $0x4] sm:$0xf]
        %v1314 = vld [vmem:[%s4 + $0x8] sm:$0xf]
        %v1315 = vld [vmem:[%s4 + $0xc] sm:$0xf]
        %v1316 = vld [vmem:[%s4 + $0x10] sm:$0xf]
        %v1317 = vld [vmem:[%s4 + $0x14] sm:$0xf]
        %v1318 = vld [vmem:[%s4 + $0x18] sm:$0xf]
        %v1319 = vld [vmem:[%s4 + $0x1c] sm:$0xf]
        %v1320 = vld [vmem:[%s5] sm:$0x1]
        %v1322 = vperm.slane %v1320, 0
        %v1332 = vunpack.c.l.b16 %v1312
        %v1333 = vunpack.c.l.b16 %v1313
        %v1334 = vunpack.c.l.b16 %v1314
        %v1335 = vunpack.c.l.b16 %v1315
        %v1336 = vunpack.c.l.b16 %v1316
        %v1337 = vunpack.c.l.b16 %v1317
        %v1338 = vunpack.c.l.b16 %v1318
        %v1339 = vunpack.c.l.b16 %v1319
        %v1340 = vpack.c.b16 %v1333, %v1332
        %v1341 = vpack.c.b16 %v1335, %v1334
        %v1342 = vpack.c.b16 %v1337, %v1336
        %v1343 = vpack.c.b16 %v1339, %v1338
        %vm1348 = vcmask 523264
        %v1350 = vsel %vm1348, %v1311, 0
        %1352 = vmatpush.bf16.msra.mxu0 0
        %1353 = vmatpush.bf16.msra.mxu0 0
        %1354 = vmatpush.bf16.msra.mxu0 0
        %1355 = vmatpush.bf16.msra.mxu0 0
        %1356 = vmatpush.bf16.msra.mxu0 %v1343
        %1357 = vmatpush.bf16.msra.mxu0 %v1342
        %1358 = vmatpush.bf16.msra.mxu0 %v1341
        %1359 = vmatpush.bf16.msra.mxu0 %v1340
        %1360 = vmatmul.bf16.gmra.mxu0 %v1350
        %v1361 = vpop.f32.mrf.mxu0
        %v1362 = vadd.f32 %v1322, %v1361
        %v1363 = vpop.f32.mrf.mxu0
        %1364 = vdwg.mxu0
        %v1365 = vmax.f32 %v1362, 0.0
        %v1366 = vld [vmem:[%s6] sm:$0x1]
        %v1368 = vperm.slane %v1366, 0
        %v1370 = vmul.f32 %v1365, %v1368
        %vm1371 = vcmask 261120
        %v1372 = vsel %vm1371, %v1370, 0.0
        %1373 = vadd.xlane.f32.xlu0 %v1372
        %v1374 = vpop.xlane.xlu0 %1373
        %v1375 = vld [vmem:[#allocation2] sm:$0x1]
        %v1377 = vperm.slane %v1375, 0
        %v1379 = vadd.f32 %v1374, %v1377
        %v1380 = vxor.u32 %v1379, 2147483648
        %v1381 = vmul.f32 %v1380, 1.442695
        %v1382 = vpow.pop %v1381
        %v1383 = vadd.f32 %v1382, 1.0
        %v1384 = vrcp.pop %v1383
        %v1385 = vmul.f32 %v1383, %v1384
        %v1386 = vsub.f32 1.0, %v1385
        %v1387 = vmul.f32 %v1384, %v1386
        %v1388 = vadd.f32 %v1384, %v1387
        %vm1389 = vweird.f32 %v1383
        %vm1390 = vweird.f32 %v1384
        %vm1391 = vmor %vm1389, %vm1390
        %v1392 = vsel %vm1391, %v1384, %v1388
        %v1393 = vand.u32 2147483647, %v1383
        %vm1394 = vcmp.eq.f32.partialorder %v1393, 8.507059e+37
        %v1395 = vand.u32 %v1383, 2147483648
        %v1396 = vor.u32 1.1754944e-38, %v1395
        %v1397 = vsel %vm1394, %v1396, %v1392
        %v1398 = vmul.f32 1.0, %v1397
        %v1399 = vld [vmem:[%s9] sm:$0x1]
        %v1401 = vperm.slane %v1399, 0
        %v1403 = vadd.f32 %v1302, %v1401
        %v1404 = vmax.f32 %v1403, 0.0
        %v1405 = vpack.c.bf16 %v1404, %v1404
        %v1406 = vld [vmem:[%s10] sm:$0xf]
        %v1407 = vld [vmem:[%s10 + $0x4] sm:$0xf]
        %v1408 = vld [vmem:[%s10 + $0x8] sm:$0xf]
        %v1409 = vld [vmem:[%s10 + $0xc] sm:$0xf]
        %v1410 = vld [vmem:[%s10 + $0x10] sm:$0xf]
        %v1411 = vld [vmem:[%s10 + $0x14] sm:$0xf]
        %v1412 = vld [vmem:[%s10 + $0x18] sm:$0xf]
        %v1413 = vld [vmem:[%s10 + $0x1c] sm:$0xf]
        %v1414 = vld [vmem:[%s11] sm:$0x1]
        %v1416 = vperm.slane %v1414, 0
        %v1426 = vunpack.c.l.b16 %v1406
        %v1427 = vunpack.c.l.b16 %v1407
        %v1428 = vunpack.c.l.b16 %v1408
        %v1429 = vunpack.c.l.b16 %v1409
        %v1430 = vunpack.c.l.b16 %v1410
        %v1431 = vunpack.c.l.b16 %v1411
        %v1432 = vunpack.c.l.b16 %v1412
        %v1433 = vunpack.c.l.b16 %v1413
        %v1434 = vpack.c.b16 %v1427, %v1426
        %v1435 = vpack.c.b16 %v1429, %v1428
        %v1436 = vpack.c.b16 %v1431, %v1430
        %v1437 = vpack.c.b16 %v1433, %v1432
        %v1443 = vsel %vm1348, %v1405, 0
        %1445 = vmatpush.bf16.msra.mxu0 0
        %1446 = vmatpush.bf16.msra.mxu0 0
        %1447 = vmatpush.bf16.msra.mxu0 0
        %1448 = vmatpush.bf16.msra.mxu0 0
        %1449 = vmatpush.bf16.msra.mxu0 %v1437
        %1450 = vmatpush.bf16.msra.mxu0 %v1436
        %1451 = vmatpush.bf16.msra.mxu0 %v1435
        %1452 = vmatpush.bf16.msra.mxu0 %v1434
        %1453 = vmatmul.bf16.gmra.mxu0 %v1443
        %v1454 = vpop.f32.mrf.mxu0
        %v1455 = vadd.f32 %v1416, %v1454
        %v1456 = vpop.f32.mrf.mxu0
        %1457 = vdwg.mxu0
        %v1458 = vmax.f32 %v1455, 0.0
        %v1459 = vld [vmem:[%s12] sm:$0x1]
        %v1461 = vperm.slane %v1459, 0
        %v1463 = vmul.f32 %v1458, %v1461
        %v1464 = vsel %vm1371, %v1463, 0.0
        %1465 = vadd.xlane.f32.xlu0 %v1464
        %v1466 = vpop.xlane.xlu0 %1465
        %v1467 = vld [vmem:[#allocation3] sm:$0x1]
        %v1469 = vperm.slane %v1467, 0
        %v1471 = vadd.f32 %v1466, %v1469
        %v1472 = vxor.u32 %v1471, 2147483648
        %v1473 = vmul.f32 %v1472, 1.442695
        %v1474 = vpow.pop %v1473
        %v1475 = vadd.f32 %v1474, 1.0
        %v1476 = vrcp.pop %v1475
        %v1477 = vmul.f32 %v1475, %v1476
        %v1478 = vsub.f32 1.0, %v1477
        %v1479 = vmul.f32 %v1476, %v1478
        %v1480 = vadd.f32 %v1476, %v1479
        %vm1481 = vweird.f32 %v1475
        %vm1482 = vweird.f32 %v1476
        %vm1483 = vmor %vm1481, %vm1482
        %v1484 = vsel %vm1483, %v1476, %v1480
        %v1485 = vand.u32 2147483647, %v1475
        %vm1486 = vcmp.eq.f32.partialorder %v1485, 8.507059e+37
        %v1487 = vand.u32 %v1475, 2147483648
        %v1488 = vor.u32 1.1754944e-38, %v1487
        %v1489 = vsel %vm1486, %v1488, %v1484
        %v1490 = vmul.f32 1.0, %v1489
        %v1491 = vadd.f32 %v1167, %v1289
        %v1492 = vld [vmem:[%s14] sm:$0x1]
        %v1494 = vperm.slane %v1492, 0
        %v1496 = vadd.f32 %v1491, %v1494
        %v1497 = vmax.f32 %v1496, 0.0
        %v1498 = vpack.c.bf16 %v1497, %v1497
        %v1499 = vld [vmem:[%s15] sm:$0xf]
        %v1500 = vld [vmem:[%s15 + $0x4] sm:$0xf]
        %v1501 = vld [vmem:[%s15 + $0x8] sm:$0xf]
        %v1502 = vld [vmem:[%s15 + $0xc] sm:$0xf]
        %v1503 = vld [vmem:[%s15 + $0x10] sm:$0xf]
        %v1504 = vld [vmem:[%s15 + $0x14] sm:$0xf]
        %v1505 = vld [vmem:[%s15 + $0x18] sm:$0xf]
        %v1506 = vld [vmem:[%s15 + $0x1c] sm:$0xf]
        %v1507 = vld [vmem:[%s15 + $0x20] sm:$0xf]
        %v1508 = vld [vmem:[%s15 + $0x24] sm:$0xf]
        %v1509 = vld [vmem:[%s15 + $0x28] sm:$0xf]
        %v1510 = vld [vmem:[%s15 + $0x2c] sm:$0xf]
        %v1511 = vld [vmem:[%s15 + $0x30] sm:$0xf]
        %v1512 = vld [vmem:[%s15 + $0x34] sm:$0xf]
        %v1513 = vld [vmem:[%s15 + $0x38] sm:$0xf]
        %v1514 = vld [vmem:[%s15 + $0x3c] sm:$0xf]
        %v1515 = vld [vmem:[%s16] sm:$0x1]
        %v1517 = vperm.slane %v1515, 0
        %v1535 = vunpack.c.l.b16 %v1499
        %v1536 = vunpack.c.l.b16 %v1500
        %v1537 = vunpack.c.l.b16 %v1501
        %v1538 = vunpack.c.l.b16 %v1502
        %v1539 = vunpack.c.l.b16 %v1503
        %v1540 = vunpack.c.l.b16 %v1504
        %v1541 = vunpack.c.l.b16 %v1505
        %v1542 = vunpack.c.l.b16 %v1506
        %v1543 = vunpack.c.l.b16 %v1507
        %v1544 = vunpack.c.l.b16 %v1508
        %v1545 = vunpack.c.l.b16 %v1509
        %v1546 = vunpack.c.l.b16 %v1510
        %v1547 = vunpack.c.l.b16 %v1511
        %v1548 = vunpack.c.l.b16 %v1512
        %v1549 = vunpack.c.l.b16 %v1513
        %v1550 = vunpack.c.l.b16 %v1514
        %v1551 = vpack.c.b16 %v1536, %v1535
        %v1552 = vpack.c.b16 %v1538, %v1537
        %v1553 = vpack.c.b16 %v1540, %v1539
        %v1554 = vpack.c.b16 %v1542, %v1541
        %v1555 = vpack.c.b16 %v1544, %v1543
        %v1556 = vpack.c.b16 %v1546, %v1545
        %v1557 = vpack.c.b16 %v1548, %v1547
        %v1558 = vpack.c.b16 %v1550, %v1549
        %1567 = vmatpush.bf16.msra.mxu0 %v1558
        %1568 = vmatpush.bf16.msra.mxu0 %v1557
        %1569 = vmatpush.bf16.msra.mxu0 %v1556
        %1570 = vmatpush.bf16.msra.mxu0 %v1555
        %1571 = vmatpush.bf16.msra.mxu0 %v1554
        %1572 = vmatpush.bf16.msra.mxu0 %v1553
        %1573 = vmatpush.bf16.msra.mxu0 %v1552
        %1574 = vmatpush.bf16.msra.mxu0 %v1551
        %1575 = vmatmul.bf16.gmra.mxu0 %v1498
        %v1576 = vpop.f32.mrf.mxu0
        %v1577 = vadd.f32 %v1517, %v1576
        %v1578 = vpop.f32.mrf.mxu0
        %1579 = vdwg.mxu0
        %v1580 = vmax.f32 %v1577, 0.0
        %v1581 = vld [vmem:[%s17] sm:$0x1]
        %v1583 = vperm.slane %v1581, 0
        %v1585 = vmul.f32 %v1580, %v1583
        %v1586 = vsel %vm1348, %v1585, 0.0
        %1587 = vadd.xlane.f32.xlu0 %v1586
        %v1588 = vpop.xlane.xlu0 %1587
        %v1589 = vld [vmem:[#allocation4] sm:$0x1]
        %v1591 = vperm.slane %v1589, 0
        %v1593 = vadd.f32 %v1588, %v1591
        %v1594 = vxor.u32 %v1593, 2147483648
        %v1595 = vmul.f32 %v1594, 1.442695
        %v1596 = vpow.pop %v1595
        %v1597 = vadd.f32 %v1596, 1.0
        %v1598 = vrcp.pop %v1597
        %v1599 = vmul.f32 %v1597, %v1598
        %v1600 = vsub.f32 1.0, %v1599
        %v1601 = vmul.f32 %v1598, %v1600
        %v1602 = vadd.f32 %v1598, %v1601
        %vm1603 = vweird.f32 %v1597
        %vm1604 = vweird.f32 %v1598
        %vm1605 = vmor %vm1603, %vm1604
        %v1606 = vsel %vm1605, %v1598, %v1602
        %v1607 = vand.u32 2147483647, %v1597
        %vm1608 = vcmp.eq.f32.partialorder %v1607, 8.507059e+37
        %v1609 = vand.u32 %v1597, 2147483648
        %v1610 = vor.u32 1.1754944e-38, %v1609
        %v1611 = vsel %vm1608, %v1610, %v1606
        %v1612 = vmul.f32 1.0, %v1611
        %v1613 = vld [vmem:[%s19] sm:$0xff]
        %v1614 = vld [vmem:[%s20] sm:$0x1]
        %v1615 = vperm.slane %v1613, 0
        %v1616 = vmul.f32 %v807, %v1615
        %v1618 = vperm.slane %v1614, 0
        %v1620 = vadd.f32 %v1618, %v1616
        %v1621 = vperm.slane %v1613, 1
        %v1622 = vmul.f32 %v833, %v1621
        %v1623 = vadd.f32 %v1620, %v1622
        %v1624 = vperm.slane %v1613, 2
        %v1625 = vmul.f32 %v919, %v1624
        %v1626 = vadd.f32 %v1623, %v1625
        %v1627 = vperm.slane %v1613, 3
        %v1628 = vmul.f32 %v938, %v1627
        %v1629 = vadd.f32 %v1626, %v1628
        %v1630 = vperm.slane %v1613, 4
        %v1631 = vmul.f32 %v1005, %v1630
        %v1632 = vadd.f32 %v1629, %v1631
        %1634 = vset.pattern.permute.xlu0 0
        %1635 = vperm.xlu0 %1634, %v1398
        %v1636 = vpop.permute.xlu0 %1635
        %v1638 = vperm.slane %v1613, 5
        %v1639 = vmul.f32 %v1636, %v1638
        %v1640 = vadd.f32 %v1632, %v1639
        %1642 = vset.pattern.permute.xlu0 0
        %1643 = vperm.xlu0 %1642, %v1490
        %v1644 = vpop.permute.xlu0 %1643
        %v1646 = vperm.slane %v1613, 6
        %v1647 = vmul.f32 %v1644, %v1646
        %v1648 = vadd.f32 %v1640, %v1647
        %1650 = vset.pattern.permute.xlu0 0
        %1651 = vperm.xlu0 %1650, %v1612
        %v1652 = vpop.permute.xlu0 %1651
        %v1654 = vperm.slane %v1613, 7
        %v1655 = vmul.f32 %v1652, %v1654
        %v1656 = vadd.f32 %v1648, %v1655
        %v1657 = vmax.f32 %v1656, 0.0
        %v1658 = vld [vmem:[%s21] sm:$0xf]
        %v1659 = vld [vmem:[%s22] sm:$0xf]
        %v1660 = vperm.slane %v1658, 0
        %v1661 = vmul.f32 %v1657, %v1660
        %vm1662 = vcmask 130048
        %v1663 = vsel %vm1662, %v1661, 0.0
        %1664 = vadd.xlane.f32.xlu0 %v1663
        %v1665 = vpop.xlane.xlu0 %1664
        %v1666 = vperm.slane %v1659, 0
        %v1667 = vadd.f32 %v1665, %v1666
        %v1668 = vxor.u32 %v1667, 2147483648
        %v1669 = vmul.f32 %v1668, 1.442695
        %v1670 = vpow.pop %v1669
        %v1671 = vadd.f32 %v1670, 1.0
        %v1672 = vrcp.pop %v1671
        %v1673 = vmul.f32 %v1671, %v1672
        %v1674 = vsub.f32 1.0, %v1673
        %v1675 = vmul.f32 %v1672, %v1674
        %v1676 = vadd.f32 %v1672, %v1675
        %vm1677 = vweird.f32 %v1671
        %vm1678 = vweird.f32 %v1672
        %vm1679 = vmor %vm1677, %vm1678
        %v1680 = vsel %vm1679, %v1672, %v1676
        %v1681 = vand.u32 2147483647, %v1671
        %vm1682 = vcmp.eq.f32.partialorder %v1681, 8.507059e+37
        %v1683 = vand.u32 %v1671, 2147483648
        %v1684 = vor.u32 1.1754944e-38, %v1683
        %v1685 = vsel %vm1682, %v1684, %v1680
        %v1686 = vmul.f32 1.0, %v1685
        %v1687 = vperm.slane %v1658, 1
        %v1688 = vmul.f32 %v1657, %v1687
        %v1689 = vsel %vm1662, %v1688, 0.0
        %1690 = vadd.xlane.f32.xlu0 %v1689
        %v1691 = vpop.xlane.xlu0 %1690
        %v1692 = vperm.slane %v1659, 1
        %v1693 = vadd.f32 %v1691, %v1692
        %v1694 = vxor.u32 %v1693, 2147483648
        %v1695 = vmul.f32 %v1694, 1.442695
        %v1696 = vpow.pop %v1695
        %v1697 = vadd.f32 %v1696, 1.0
        %v1698 = vrcp.pop %v1697
        %v1699 = vmul.f32 %v1697, %v1698
        %v1700 = vsub.f32 1.0, %v1699
        %v1701 = vmul.f32 %v1698, %v1700
        %v1702 = vadd.f32 %v1698, %v1701
        %vm1703 = vweird.f32 %v1697
        %vm1704 = vweird.f32 %v1698
        %vm1705 = vmor %vm1703, %vm1704
        %v1706 = vsel %vm1705, %v1698, %v1702
        %v1707 = vand.u32 2147483647, %v1697
        %vm1708 = vcmp.eq.f32.partialorder %v1707, 8.507059e+37
        %v1709 = vand.u32 %v1697, 2147483648
        %v1710 = vor.u32 1.1754944e-38, %v1709
        %v1711 = vsel %vm1708, %v1710, %v1706
        %v1712 = vmul.f32 1.0, %v1711
        %v1713 = vperm.slane %v1658, 2
        %v1714 = vmul.f32 %v1657, %v1713
        %v1715 = vsel %vm1662, %v1714, 0.0
        %1716 = vadd.xlane.f32.xlu0 %v1715
        %v1717 = vpop.xlane.xlu0 %1716
        %v1718 = vperm.slane %v1659, 2
        %v1719 = vadd.f32 %v1717, %v1718
        %v1720 = vxor.u32 %v1719, 2147483648
        %v1721 = vmul.f32 %v1720, 1.442695
        %v1722 = vpow.pop %v1721
        %v1723 = vadd.f32 %v1722, 1.0
        %v1724 = vrcp.pop %v1723
        %v1725 = vmul.f32 %v1723, %v1724
        %v1726 = vsub.f32 1.0, %v1725
        %v1727 = vmul.f32 %v1724, %v1726
        %v1728 = vadd.f32 %v1724, %v1727
        %vm1729 = vweird.f32 %v1723
        %vm1730 = vweird.f32 %v1724
        %vm1731 = vmor %vm1729, %vm1730
        %v1732 = vsel %vm1731, %v1724, %v1728
        %v1733 = vand.u32 2147483647, %v1723
        %vm1734 = vcmp.eq.f32.partialorder %v1733, 8.507059e+37
        %v1735 = vand.u32 %v1723, 2147483648
        %v1736 = vor.u32 1.1754944e-38, %v1735
        %v1737 = vsel %vm1734, %v1736, %v1732
        %v1738 = vmul.f32 1.0, %v1737
        %v1739 = vperm.slane %v1658, 3
        %v1740 = vmul.f32 %v1657, %v1739
        %v1741 = vsel %vm1662, %v1740, 0.0
        %1742 = vadd.xlane.f32.xlu0 %v1741
        %v1743 = vpop.xlane.xlu0 %1742
        %v1744 = vperm.slane %v1659, 3
        %v1745 = vadd.f32 %v1743, %v1744
        %v1746 = vxor.u32 %v1745, 2147483648
        %v1747 = vmul.f32 %v1746, 1.442695
        %v1748 = vpow.pop %v1747
        %v1749 = vadd.f32 %v1748, 1.0
        %v1750 = vrcp.pop %v1749
        %v1751 = vmul.f32 %v1749, %v1750
        %v1752 = vsub.f32 1.0, %v1751
        %v1753 = vmul.f32 %v1750, %v1752
        %v1754 = vadd.f32 %v1750, %v1753
        %vm1755 = vweird.f32 %v1749
        %vm1756 = vweird.f32 %v1750
        %vm1757 = vmor %vm1755, %vm1756
        %v1758 = vsel %vm1757, %v1750, %v1754
        %v1759 = vand.u32 2147483647, %v1749
        %vm1760 = vcmp.eq.f32.partialorder %v1759, 8.507059e+37
        %v1761 = vand.u32 %v1749, 2147483648
        %v1762 = vor.u32 1.1754944e-38, %v1761
        %v1763 = vsel %vm1760, %v1762, %v1758
        %v1764 = vmul.f32 1.0, %v1763
        %v1765 = vlaneseq
        %v1766 = vand.u32 %v1765, 127
        %vm1767 = vcmp.eq.s32.totalorder %v1766, 0
        %v1768 = vsel %vm1767, %v807, 0.0
        %vm1769 = vcmp.eq.s32.totalorder %v1766, 1
        %v1770 = vsel %vm1769, %v833, %v1768
        %vm1771 = vcmp.eq.s32.totalorder %v1766, 2
        %v1772 = vsel %vm1771, %v887, %v1770
        %vm1773 = vcmp.eq.s32.totalorder %v1766, 3
        %v1774 = vsel %vm1773, %v901, %v1772
        %vm1775 = vcmp.eq.s32.totalorder %v1766, 4
        %v1776 = vsel %vm1775, %v919, %v1774
        %vm1777 = vcmp.eq.s32.totalorder %v1766, 5
        %v1778 = vsel %vm1777, %v938, %v1776
        %vm1779 = vcmp.eq.s32.totalorder %v1766, 6
        %v1780 = vsel %vm1779, %v978, %v1778
        %vm1781 = vcmp.eq.s32.totalorder %v1766, 7
        %v1782 = vsel %vm1781, %v985, %v1780
        %vm1783 = vcmp.eq.s32.totalorder %v1766, 8
        %v1784 = vsel %vm1783, %v1005, %v1782
        %vm1785 = vcmp.eq.s32.totalorder %v1766, 9
        %v1786 = vsel %vm1785, %v1026, %v1784
        %vm1787 = vcmp.eq.s32.totalorder %v1766, 10
        %v1788 = vsel %vm1787, %v1060, %v1786
        %vm1789 = vcmp.eq.s32.totalorder %v1766, 11
        %v1790 = vsel %vm1789, %v1636, %v1788
        %vm1791 = vcmp.eq.s32.totalorder %v1766, 12
        %v1792 = vsel %vm1791, %v1644, %v1790
        %vm1793 = vcmp.eq.s32.totalorder %v1766, 13
        %v1794 = vsel %vm1793, %v1652, %v1792
        %vm1795 = vcmp.eq.s32.totalorder %v1766, 14
        %1797 = vset.pattern.permute.xlu0 0
        %1798 = vperm.xlu0 %1797, %v1686
        %v1799 = vpop.permute.xlu0 %1798
        %v1801 = vsel %vm1795, %v1799, %v1794
        %vm1802 = vcmp.eq.s32.totalorder %v1766, 15
        %1804 = vset.pattern.permute.xlu0 0
        %1805 = vperm.xlu0 %1804, %v1712
        %v1806 = vpop.permute.xlu0 %1805
        %v1808 = vsel %vm1802, %v1806, %v1801
        %vm1809 = vcmp.eq.s32.totalorder %v1766, 16
        %1811 = vset.pattern.permute.xlu0 0
        %1812 = vperm.xlu0 %1811, %v1738
        %v1813 = vpop.permute.xlu0 %1812
        %v1815 = vsel %vm1809, %v1813, %v1808
        %vm1816 = vcmp.eq.s32.totalorder %v1766, 17
        %1818 = vset.pattern.permute.xlu0 0
        %1819 = vperm.xlu0 %1818, %v1764
        %v1820 = vpop.permute.xlu0 %1819
        %v1822 = vsel %vm1816, %v1820, %v1815
        %1823 = vst [vmem:[%s720] sm:$0xff] %v1822
        %s1824 = sand.u32 %s544, 1
        %s1825 = scalar_lea.sflag [#allocation6], %s1824
        %s1826 = sand.u32 %s544, 1
        %s1827 = smul.addr %s1826, 8
        %s1828 = scalar_lea.vmem [#allocation5], %s1827
        // Predicated region
        $region113: #{tpu_custom_call.1} parent=111 // pred_check
          %p1829 = pneg %p554
        $region114: #{tpu_custom_call.1} parent=111 // pred_check_branch
          %1831 = sbr.rel (%p1829) target = $region116
        $region115: #{tpu_custom_call.1} parent=111 // pred_region
          %1833 = vsyncadd %s1825, 0
          %s1834 = smul.addr %s43, 8
          %s1835 = scalar_lea.hbm %s23, %s1834
          %s1837 = sshll.u32 %s1828, 4
          %s1838 = int_to_ptr.vmem [resolvable:$true] %s1837
          %s1839 = sshll.u32 %s1835, 4
          %s1840 = int_to_ptr.hbm [resolvable:$true] %s1839
          %1842 = dma.vmem_to_hbm [thread:$0]  %s1838, 128, %s1840, %s1825
        $region116: #{tpu_custom_call.1} parent=111 // pred_fallthru
          _
      $region112: #{tpu_custom_call.1} parent=5 // pred_fallthru
        _
      %p1843 = scmp.le.s32.totalorder 2, %s38
      // Predicated region
      $region117: #{tpu_custom_call.1} parent=5 // pred_check
        %p1844 = pneg %p1843
      $region118: #{tpu_custom_call.1} parent=5 // pred_check_branch
        %1846 = sbr.rel (%p1844) target = $region120
      $region119: #{tpu_custom_call.1} parent=5 // pred_region
        %s1847 = ssub.s32 %s38, 2
        // Predicated region
        $region121: #{tpu_custom_call.1} parent=119 // pred_check
          %p1848 = pneg %p560
        $region122: #{tpu_custom_call.1} parent=119 // pred_check_branch
          %1850 = sbr.rel (%p1848) target = $region124
        $region123: #{tpu_custom_call.1} parent=119 // pred_region
          %s1851 = sand.u32 %s545, 1
          %s1852 = scalar_lea.sflag [#allocation6], %s1851
          %s1853 = sand.u32 %s545, 1
          %s1854 = smul.addr %s1853, 8
          %s1855 = scalar_lea.vmem [#allocation5], %s1854
          %1857 = dma.done %s1852, 128
        $region124: #{tpu_custom_call.1} parent=119 // pred_fallthru
          _
      $region120: #{tpu_custom_call.1} parent=5 // pred_fallthru
        _
    $region6: #{tpu_custom_call.1} parent=1 // loop_footer
      %s42 = sadd.s32 1, %s38
    $region7: #{tpu_custom_call.1} parent=1 // loop_footer_branch
      %37 = sbr.rel target = $region3
    $region8: #{tpu_custom_call.1} parent=1 // loop_exit
      _
    %1858 = vsyncpa [#allocation6], 1
    %s1859 = scalar_lea.sflag [#allocation6], 1
    %1860 = vsyncpa %s1859, 1

</llo_original>
